<compile_context>
chip_gen: v7x
topology: tpu7x:2x2x1
jax: 0.10.0
libtpu: 0.0.40
codegen_flags: <defaults>
</compile_context>

<pallas_src>
import jax
import jax.numpy as jnp
from jax.experimental import pallas as pl
from jax.experimental.pallas import tpu as pltpu

E_NUM = 1            # e_num = 1 if criterion_s else 2  -> criterion_s truthy
U_NUM = 100
V_NUM = 512
HIDDEN = 256
OUT_PAD = 128        # 100 output features padded to one full 128-lane slab
U_PAD = 128          # u / W1_u contraction dim padded 100 -> 128 (aligned MXU K)
IN_DIM = U_NUM + V_NUM + E_NUM   # 613
NEG_SLOPE = 0.01                 # nn.LeakyReLU default


def _uphi_kernel(e_ref, v_ref, u_ref, w1e_ref, w1v_ref, w1u_ref, b1_ref,
                 w2_ref, b2_ref, o_ref):
    # MXU: (tb,512) @ (512,256) — contraction dim 128-aligned.  v is cast to the
    # MXU dtype on the VPU here (hidden under its own DMA); fp32 accumulation.
    h = jnp.dot(v_ref[...].astype(w1v_ref.dtype), w1v_ref[...],
                preferred_element_type=jnp.float32)
    # e_num == 1 feature: VPU outer product instead of a K=1 matmul.
    h = h + e_ref[...].astype(jnp.float32) * w1e_ref[...]
    # Batch-invariant u contribution, folded in-kernel.  u arrives as a (1,128)
    # partial block over the (1,100) array; zero the undefined tail lanes, then a
    # K=128-aligned tiny GEMV against the zero-row-padded W1_u.  Recomputed per
    # grid step — negligible, the kernel is HBM-bound.
    lanes = jax.lax.broadcasted_iota(jnp.int32, (1, U_PAD), 1)
    u_vec = jnp.where(lanes < U_NUM, u_ref[...].astype(jnp.float32), 0.0)
    u_bias = jnp.dot(u_vec, w1u_ref[...], preferred_element_type=jnp.float32)
    h = h + b1_ref[...] + u_bias
    h = jnp.where(h > 0, h, NEG_SLOPE * h)                 # LeakyReLU(0.01)
    # MXU: (tb,256) @ (256,128); lane-dense 128-wide stores.
    y = jnp.dot(h.astype(w2_ref.dtype), w2_ref[...],
                preferred_element_type=jnp.float32)
    o_ref[...] = (y + b2_ref[...]).astype(o_ref.dtype)


def _round_up(x, m):
    return (x + m - 1) // m * m


def prepare_uphi_params(w1, b1, w2, b2, *, compute_dtype=jnp.bfloat16):
    """One-time weight preprocessing (hoisted out of the per-call path).

    w1: (613,256), b1: (256,), w2: (256,100), b2: (100,).  Linear weights are
    stored transposed so the kernel computes x @ W + b.  compute_dtype is the
    MXU input dtype (bf16 default on v5e/v6e/v7x; accumulation is always fp32).
    """
    compute_dtype = jnp.dtype(compute_dtype)
    w1 = jnp.asarray(w1, jnp.float32)
    w1_u = jnp.zeros((U_PAD, HIDDEN), jnp.float32).at[:U_NUM, :].set(
        w1[E_NUM + V_NUM:, :])                              # (128,256), rows 100.. = 0
    w2_p = jnp.zeros((HIDDEN, OUT_PAD), jnp.float32).at[:, :U_NUM].set(
        jnp.asarray(w2, jnp.float32))
    b2_p = jnp.zeros((1, OUT_PAD), jnp.float32).at[:, :U_NUM].set(
        jnp.asarray(b2, jnp.float32).reshape(1, U_NUM))
    return dict(
        w1_e=w1[:E_NUM, :],                                 # (1,256) f32, VPU path
        w1_v=w1[E_NUM:E_NUM + V_NUM, :].astype(compute_dtype),   # (512,256)
        w1_u=w1_u,                                          # (128,256) f32
        b1=jnp.asarray(b1, jnp.float32).reshape(1, HIDDEN), # (1,256) f32
        w2=w2_p.astype(compute_dtype),                      # (256,128)
        b2=b2_p,                                            # (1,128) f32
    )


def uphi_forward(e, v, u, params, *, block_batch=2048, out_dtype=jnp.float32,
                 slice_output=True, single_buffer_weights=True):
    """e: (bs,1), v: (bs,512), u: (1,100); params from prepare_uphi_params().

    Activations are consumed in their native dtype (no wrapper cast / pad / fold);
    the MXU dtype is fixed by the prepared weights.  slice_output=False returns
    the padded (bs, 128) buffer so a consumer can fuse the 100-column slice.
    """
    bs = e.shape[0]
    compute_itemsize = jnp.dtype(params["w1_v"].dtype).itemsize
    sub = 16 if compute_itemsize == 2 else (32 if compute_itemsize == 1 else 8)

    # Batch tile: big enough to amortize the ~0.35us/step pipeline overhead, capped
    # near bs/2 so the "parallel" axis yields >=2 steps for v7x's two TensorCores,
    # rounded to the packed sublane tile.  (v5e/v6e can raise block_batch to 4096;
    # keep <=2048 on v7x fp32 to stay well inside its 64 MiB VMEM.)
    tb = min(_round_up(int(block_batch), sub),
             max(sub, _round_up(pl.cdiv(bs, 2), sub)))
    grid = (pl.cdiv(bs, tb),)   # no batch pre-padding; ragged last block is masked

    def batch_spec(feat):
        return pl.BlockSpec((tb, feat), lambda i: (i, 0))

    if single_buffer_weights:
        # Constant block index across the grid -> a single VMEM buffer suffices.
        def resident(shape):
            return pl.BlockSpec(shape, lambda i: (0, 0),
                                pipeline_mode=pl.Buffered(1))
    else:
        def resident(shape):
            return pl.BlockSpec(shape, lambda i: (0, 0))

    nbytes = lambda a: a.size * a.dtype.itemsize
    flops = 2 * bs * (V_NUM * HIDDEN + HIDDEN * OUT_PAD)
    bytes_accessed = (nbytes(e) + nbytes(v) + nbytes(u)
                      + sum(nbytes(params[k]) for k in
                            ("w1_e", "w1_v", "w1_u", "b1", "w2", "b2"))
                      + bs * OUT_PAD * jnp.dtype(out_dtype).itemsize)

    out_pad = pl.pallas_call(
        _uphi_kernel,
        out_shape=jax.ShapeDtypeStruct((bs, OUT_PAD), out_dtype),
        grid=grid,
        in_specs=[
            batch_spec(E_NUM),             # e tile     (tb, 1)
            batch_spec(V_NUM),             # v tile     (tb, 512)
            resident((1, U_PAD)),          # u          (1, 128) partial block
            resident((E_NUM, HIDDEN)),     # W1_e       (1, 256)
            resident((V_NUM, HIDDEN)),     # W1_v       (512, 256)
            resident((U_PAD, HIDDEN)),     # W1_u pad   (128, 256)
            resident((1, HIDDEN)),         # b1         (1, 256)
            resident((HIDDEN, OUT_PAD)),   # W2 pad     (256, 128)
            resident((1, OUT_PAD)),        # b2 pad     (1, 128)
        ],
        out_specs=pl.BlockSpec((tb, OUT_PAD), lambda i: (i, 0)),
        compiler_params=pltpu.CompilerParams(
            dimension_semantics=("parallel",),   # shards batch tiles on v7x's 2 TCs
            vmem_limit_bytes=64 * 1024 * 1024),  # footprint ~13 MiB @ tb=2048 -> safe
        cost_estimate=pl.CostEstimate(
            flops=flops, transcendentals=0, bytes_accessed=bytes_accessed),
    )(e, v, u, params["w1_e"], params["w1_v"], params["w1_u"], params["b1"],
      params["w2"], params["b2"])

    if slice_output:
        # NOTE: a separate slice unless fused by a consumer / jit; downstream code
        # that can consume the 128-wide padded layout should pass slice_output=False.
        return out_pad[:, :U_NUM]
    return out_pad


def init_params(key):
    """Deterministic init matching nn.Linear's uniform(-1/sqrt(fan_in), +)."""
    k1, k2, k3, k4 = jax.random.split(key, 4)
    bound1 = 1.0 / jnp.sqrt(float(IN_DIM))
    bound2 = 1.0 / jnp.sqrt(float(HIDDEN))
    w1 = jax.random.uniform(k1, (IN_DIM, HIDDEN), jnp.float32, -bound1, bound1)
    b1 = jax.random.uniform(k2, (HIDDEN,), jnp.float32, -bound1, bound1)
    w2 = jax.random.uniform(k3, (HIDDEN, U_NUM), jnp.float32, -bound2, bound2)
    b2 = jax.random.uniform(k4, (U_NUM,), jnp.float32, -bound2, bound2)
    return w1, b1, w2, b2


def _reference(e, v, u, w1, b1, w2, b2):
    bs = e.shape[0]
    x = jnp.concatenate([e, v, jnp.broadcast_to(u, (bs, U_NUM))], axis=1)
    h = x @ w1 + b1
    h = jnp.where(h > 0, h, NEG_SLOPE * h)
    return h @ w2 + b2


if __name__ == "__main__":
    key = jax.random.PRNGKey(0)
    kp, ke, kv, ku = jax.random.split(key, 4)

    w1, b1, w2, b2 = init_params(kp)

    bs = 8  # small demo batch
    e = jax.random.normal(ke, (bs, E_NUM), jnp.float32)
    v = jax.random.normal(kv, (bs, V_NUM), jnp.float32)
    u = jax.random.normal(ku, (1, U_NUM), jnp.float32)

    ref = _reference(e, v, u, w1, b1, w2, b2)

    def run(params, **kw):
        try:
            return jax.block_until_ready(uphi_forward(e, v, u, params, **kw))
        except Exception:
            # pl.Buffered(1) not supported on this jax build -> fall back to
            # default double-buffered weight blocks (identical numerics).
            return jax.block_until_ready(
                uphi_forward(e, v, u, params, single_buffer_weights=False, **kw))

    # Exact fp32 MXU path.
    p_f32 = prepare_uphi_params(w1, b1, w2, b2, compute_dtype=jnp.float32)
    out32 = run(p_f32)
    assert out32.shape == (bs, U_NUM)
    assert jnp.allclose(out32, ref, atol=1e-4, rtol=1e-4), "fp32 mismatch vs reference"

    # Default bf16 MXU path (fp32 accumulation; the 256-wide hidden h is also cast
    # to bf16 before the second matmul -> relaxed tolerance, documented for consumers).
    p_bf16 = prepare_uphi_params(w1, b1, w2, b2)
    out_bf = run(p_bf16)
    assert out_bf.shape == (bs, U_NUM)
    assert jnp.allclose(out_bf, ref, atol=5e-2, rtol=5e-2), "bf16 mismatch vs reference"

    # Padded-output path (no epilogue slice) — what a fusing consumer would take.
    out_padded = run(p_bf16, slice_output=False)
    assert out_padded.shape == (bs, OUT_PAD)
    assert jnp.allclose(out_padded[:, :U_NUM], out_bf, atol=1e-6, rtol=1e-6)

    print("KERNEL_OK")
</pallas_src>

<mosaic_0001>
module attributes {stable_mosaic.version = 11 : i64} {
  func.func @_uphi_kernel(%arg0: i32, %arg1: memref<8x1xf32, #tpu.memory_space<vmem>>, %arg2: memref<8x512xf32, #tpu.memory_space<vmem>>, %arg3: memref<1x128xf32, #tpu.memory_space<vmem>>, %arg4: memref<1x256xf32, #tpu.memory_space<vmem>>, %arg5: memref<512x256xf32, #tpu.memory_space<vmem>>, %arg6: memref<128x256xf32, #tpu.memory_space<vmem>>, %arg7: memref<1x256xf32, #tpu.memory_space<vmem>>, %arg8: memref<256x128xf32, #tpu.memory_space<vmem>>, %arg9: memref<1x128xf32, #tpu.memory_space<vmem>>, %arg10: memref<8x128xf32, #tpu.memory_space<vmem>>) attributes {dimension_semantics = [#tpu.dimension_semantics<parallel>], iteration_bounds = array<i64: 1>, scalar_prefetch = 0 : i64, scratch_operands = 0 : i64, tpu.core_type = #tpu.core_type<tc>, window_params = [{transform_indices = @transform_0, window_bounds = array<i64: 8, 1>}, {transform_indices = @transform_1, window_bounds = array<i64: 8, 512>}, {pipeline_mode = #tpu.pipeline_mode<synchronous>, transform_indices = @transform_2, window_bounds = array<i64: 1, 128>}, {pipeline_mode = #tpu.pipeline_mode<synchronous>, transform_indices = @transform_3, window_bounds = array<i64: 1, 256>}, {pipeline_mode = #tpu.pipeline_mode<synchronous>, transform_indices = @transform_4, window_bounds = array<i64: 512, 256>}, {pipeline_mode = #tpu.pipeline_mode<synchronous>, transform_indices = @transform_5, window_bounds = array<i64: 128, 256>}, {pipeline_mode = #tpu.pipeline_mode<synchronous>, transform_indices = @transform_6, window_bounds = array<i64: 1, 256>}, {pipeline_mode = #tpu.pipeline_mode<synchronous>, transform_indices = @transform_7, window_bounds = array<i64: 256, 128>}, {pipeline_mode = #tpu.pipeline_mode<synchronous>, transform_indices = @transform_8, window_bounds = array<i64: 1, 128>}, {transform_indices = @transform_9, window_bounds = array<i64: 8, 128>}]} {
    %c0 = arith.constant 0 : index
    %c0_0 = arith.constant 0 : index
    %0 = vector.load %arg2[%c0, %c0_0] : memref<8x512xf32, #tpu.memory_space<vmem>>, vector<8x512xf32>
    %c0_1 = arith.constant 0 : index
    %c0_2 = arith.constant 0 : index
    %1 = vector.load %arg5[%c0_1, %c0_2] : memref<512x256xf32, #tpu.memory_space<vmem>>, vector<512x256xf32>
    %cst = arith.constant dense<0.000000e+00> : vector<8x256xf32>
    %2 = tpu.matmul %0, %1, %cst {dimension_numbers = #tpu.dot_dimension_numbers<[1], [0], [0], [1], [0, 0, 1, 1], [], []>} : vector<8x512xf32>, vector<512x256xf32>, vector<8x256xf32> -> vector<8x256xf32>
    %c0_3 = arith.constant 0 : index
    %c0_4 = arith.constant 0 : index
    %3 = vector.load %arg1[%c0_3, %c0_4] : memref<8x1xf32, #tpu.memory_space<vmem>>, vector<8x1xf32>
    %c0_5 = arith.constant 0 : index
    %c0_6 = arith.constant 0 : index
    %4 = vector.load %arg4[%c0_5, %c0_6] : memref<1x256xf32, #tpu.memory_space<vmem>>, vector<1x256xf32>
    %5 = vector.broadcast %3 : vector<8x1xf32> to vector<8x256xf32>
    %6 = vector.broadcast %4 : vector<1x256xf32> to vector<8x256xf32>
    %7 = arith.mulf %5, %6 : vector<8x256xf32>
    %8 = arith.addf %2, %7 : vector<8x256xf32>
    %9 = tpu.iota {dimensions = array<i32: 1>} : vector<1x128xi32>
    %c100_i32 = arith.constant 100 : i32
    %10 = vector.broadcast %c100_i32 : i32 to vector<1x128xi32>
    %11 = arith.cmpi slt, %9, %10 : vector<1x128xi32>
    %c0_7 = arith.constant 0 : index
    %c0_8 = arith.constant 0 : index
    %12 = vector.load %arg3[%c0_7, %c0_8] : memref<1x128xf32, #tpu.memory_space<vmem>>, vector<1x128xf32>
    %cst_9 = arith.constant 0.000000e+00 : f32
    %13 = vector.broadcast %cst_9 : f32 to vector<1x128xf32>
    %14 = arith.select %11, %12, %13 : vector<1x128xi1>, vector<1x128xf32>
    %c0_10 = arith.constant 0 : index
    %c0_11 = arith.constant 0 : index
    %15 = vector.load %arg6[%c0_10, %c0_11] : memref<128x256xf32, #tpu.memory_space<vmem>>, vector<128x256xf32>
    %cst_12 = arith.constant dense<0.000000e+00> : vector<1x256xf32>
    %16 = tpu.matmul %14, %15, %cst_12 {dimension_numbers = #tpu.dot_dimension_numbers<[1], [0], [0], [1], [0, 0, 1, 1], [], []>} : vector<1x128xf32>, vector<128x256xf32>, vector<1x256xf32> -> vector<1x256xf32>
    %c0_13 = arith.constant 0 : index
    %c0_14 = arith.constant 0 : index
    %17 = vector.load %arg7[%c0_13, %c0_14] : memref<1x256xf32, #tpu.memory_space<vmem>>, vector<1x256xf32>
    %18 = vector.broadcast %17 : vector<1x256xf32> to vector<8x256xf32>
    %19 = arith.addf %8, %18 : vector<8x256xf32>
    %20 = vector.broadcast %16 : vector<1x256xf32> to vector<8x256xf32>
    %21 = arith.addf %19, %20 : vector<8x256xf32>
    %cst_15 = arith.constant 0.000000e+00 : f32
    %22 = vector.broadcast %cst_15 : f32 to vector<8x256xf32>
    %23 = arith.cmpf ogt, %21, %22 : vector<8x256xf32>
    %cst_16 = arith.constant 0.00999999977 : f32
    %24 = vector.broadcast %cst_16 : f32 to vector<8x256xf32>
    %25 = arith.mulf %24, %21 : vector<8x256xf32>
    %26 = arith.select %23, %21, %25 : vector<8x256xi1>, vector<8x256xf32>
    %c0_17 = arith.constant 0 : index
    %c0_18 = arith.constant 0 : index
    %27 = vector.load %arg8[%c0_17, %c0_18] : memref<256x128xf32, #tpu.memory_space<vmem>>, vector<256x128xf32>
    %cst_19 = arith.constant dense<0.000000e+00> : vector<8x128xf32>
    %28 = tpu.matmul %26, %27, %cst_19 {dimension_numbers = #tpu.dot_dimension_numbers<[1], [0], [0], [1], [0, 0, 1, 1], [], []>} : vector<8x256xf32>, vector<256x128xf32>, vector<8x128xf32> -> vector<8x128xf32>
    %c0_20 = arith.constant 0 : index
    %c0_21 = arith.constant 0 : index
    %29 = vector.load %arg9[%c0_20, %c0_21] : memref<1x128xf32, #tpu.memory_space<vmem>>, vector<1x128xf32>
    %30 = vector.broadcast %29 : vector<1x128xf32> to vector<8x128xf32>
    %31 = arith.addf %28, %30 : vector<8x128xf32>
    %c0_22 = arith.constant 0 : index
    %c0_23 = arith.constant 0 : index
    %32 = vector.load %arg10[%c0_22, %c0_23] : memref<8x128xf32, #tpu.memory_space<vmem>>, vector<8x128xf32>
    tpu.vector_store %arg10[%c0_22, %c0_23], %31 {strides = array<i32>} : memref<8x128xf32, #tpu.memory_space<vmem>>, vector<8x128xf32>,
    return
  }
  func.func @transform_0(%arg0: i32) -> (i32, i32) {
    %c0_i32 = arith.constant 0 : i32
    %c0_i32_0 = arith.constant 0 : i32
    return %arg0, %c0_i32 : i32, i32
  }
  func.func @transform_1(%arg0: i32) -> (i32, i32) {
    %c0_i32 = arith.constant 0 : i32
    %c0_i32_0 = arith.constant 0 : i32
    return %arg0, %c0_i32 : i32, i32
  }
  func.func @transform_2(%arg0: i32) -> (i32, i32) {
    %c0_i32 = arith.constant 0 : i32
    %c0_i32_0 = arith.constant 0 : i32
    %c0_i32_1 = arith.constant 0 : i32
    return %c0_i32, %c0_i32_0 : i32, i32
  }
  func.func @transform_3(%arg0: i32) -> (i32, i32) {
    %c0_i32 = arith.constant 0 : i32
    %c0_i32_0 = arith.constant 0 : i32
    %c0_i32_1 = arith.constant 0 : i32
    return %c0_i32, %c0_i32_0 : i32, i32
  }
  func.func @transform_4(%arg0: i32) -> (i32, i32) {
    %c0_i32 = arith.constant 0 : i32
    %c0_i32_0 = arith.constant 0 : i32
    %c0_i32_1 = arith.constant 0 : i32
    return %c0_i32, %c0_i32_0 : i32, i32
  }
  func.func @transform_5(%arg0: i32) -> (i32, i32) {
    %c0_i32 = arith.constant 0 : i32
    %c0_i32_0 = arith.constant 0 : i32
    %c0_i32_1 = arith.constant 0 : i32
    return %c0_i32, %c0_i32_0 : i32, i32
  }
  func.func @transform_6(%arg0: i32) -> (i32, i32) {
    %c0_i32 = arith.constant 0 : i32
    %c0_i32_0 = arith.constant 0 : i32
    %c0_i32_1 = arith.constant 0 : i32
    return %c0_i32, %c0_i32_0 : i32, i32
  }
  func.func @transform_7(%arg0: i32) -> (i32, i32) {
    %c0_i32 = arith.constant 0 : i32
    %c0_i32_0 = arith.constant 0 : i32
    %c0_i32_1 = arith.constant 0 : i32
    return %c0_i32, %c0_i32_0 : i32, i32
  }
  func.func @transform_8(%arg0: i32) -> (i32, i32) {
    %c0_i32 = arith.constant 0 : i32
    %c0_i32_0 = arith.constant 0 : i32
    %c0_i32_1 = arith.constant 0 : i32
    return %c0_i32, %c0_i32_0 : i32, i32
  }
  func.func @transform_9(%arg0: i32) -> (i32, i32) {
    %c0_i32 = arith.constant 0 : i32
    %c0_i32_0 = arith.constant 0 : i32
    return %arg0, %c0_i32 : i32, i32
  }
}

module attributes {stable_mosaic.version = 11 : i64} {
  func.func @_uphi_kernel(%arg0: i32, %arg1: memref<8x1xf32, #tpu.memory_space<vmem>>, %arg2: memref<8x512xf32, #tpu.memory_space<vmem>>, %arg3: memref<1x128xf32, #tpu.memory_space<vmem>>, %arg4: memref<1x256xf32, #tpu.memory_space<vmem>>, %arg5: memref<512x256xf32, #tpu.memory_space<vmem>>, %arg6: memref<128x256xf32, #tpu.memory_space<vmem>>, %arg7: memref<1x256xf32, #tpu.memory_space<vmem>>, %arg8: memref<256x128xf32, #tpu.memory_space<vmem>>, %arg9: memref<1x128xf32, #tpu.memory_space<vmem>>, %arg10: memref<8x128xf32, #tpu.memory_space<vmem>>) attributes {dimension_semantics = [#tpu.dimension_semantics<parallel>], iteration_bounds = array<i64: 1>, scalar_prefetch = 0 : i64, scratch_operands = 0 : i64, tpu.core_type = #tpu.core_type<tc>, window_params = [{transform_indices = @transform_0, window_bounds = array<i64: 8, 1>}, {transform_indices = @transform_1, window_bounds = array<i64: 8, 512>}, {transform_indices = @transform_2, window_bounds = array<i64: 1, 128>}, {pipeline_mode = #tpu.pipeline_mode<synchronous>, transform_indices = @transform_3, window_bounds = array<i64: 1, 256>}, {pipeline_mode = #tpu.pipeline_mode<synchronous>, transform_indices = @transform_4, window_bounds = array<i64: 512, 256>}, {pipeline_mode = #tpu.pipeline_mode<synchronous>, transform_indices = @transform_5, window_bounds = array<i64: 128, 256>}, {pipeline_mode = #tpu.pipeline_mode<synchronous>, transform_indices = @transform_6, window_bounds = array<i64: 1, 256>}, {pipeline_mode = #tpu.pipeline_mode<synchronous>, transform_indices = @transform_7, window_bounds = array<i64: 256, 128>}, {pipeline_mode = #tpu.pipeline_mode<synchronous>, transform_indices = @transform_8, window_bounds = array<i64: 1, 128>}, {transform_indices = @transform_9, window_bounds = array<i64: 8, 128>}]} {
    %c0 = arith.constant 0 : index
    %c0_0 = arith.constant 0 : index
    %0 = vector.load %arg2[%c0, %c0_0] : memref<8x512xf32, #tpu.memory_space<vmem>>, vector<8x512xf32>
    %c0_1 = arith.constant 0 : index
    %c0_2 = arith.constant 0 : index
    %1 = vector.load %arg5[%c0_1, %c0_2] : memref<512x256xf32, #tpu.memory_space<vmem>>, vector<512x256xf32>
    %cst = arith.constant dense<0.000000e+00> : vector<8x256xf32>
    %2 = tpu.matmul %0, %1, %cst {dimension_numbers = #tpu.dot_dimension_numbers<[1], [0], [0], [1], [0, 0, 1, 1], [], []>} : vector<8x512xf32>, vector<512x256xf32>, vector<8x256xf32> -> vector<8x256xf32>
    %c0_3 = arith.constant 0 : index
    %c0_4 = arith.constant 0 : index
    %3 = vector.load %arg1[%c0_3, %c0_4] : memref<8x1xf32, #tpu.memory_space<vmem>>, vector<8x1xf32>
    %c0_5 = arith.constant 0 : index
    %c0_6 = arith.constant 0 : index
    %4 = vector.load %arg4[%c0_5, %c0_6] : memref<1x256xf32, #tpu.memory_space<vmem>>, vector<1x256xf32>
    %5 = vector.broadcast %3 : vector<8x1xf32> to vector<8x256xf32>
    %6 = vector.broadcast %4 : vector<1x256xf32> to vector<8x256xf32>
    %7 = arith.mulf %5, %6 : vector<8x256xf32>
    %8 = arith.addf %2, %7 : vector<8x256xf32>
    %9 = tpu.iota {dimensions = array<i32: 1>} : vector<1x128xi32>
    %c100_i32 = arith.constant 100 : i32
    %10 = vector.broadcast %c100_i32 : i32 to vector<1x128xi32>
    %11 = arith.cmpi slt, %9, %10 : vector<1x128xi32>
    %c0_7 = arith.constant 0 : index
    %c0_8 = arith.constant 0 : index
    %12 = vector.load %arg3[%c0_7, %c0_8] : memref<1x128xf32, #tpu.memory_space<vmem>>, vector<1x128xf32>
    %cst_9 = arith.constant 0.000000e+00 : f32
    %13 = vector.broadcast %cst_9 : f32 to vector<1x128xf32>
    %14 = arith.select %11, %12, %13 : vector<1x128xi1>, vector<1x128xf32>
    %c0_10 = arith.constant 0 : index
    %c0_11 = arith.constant 0 : index
    %15 = vector.load %arg6[%c0_10, %c0_11] : memref<128x256xf32, #tpu.memory_space<vmem>>, vector<128x256xf32>
    %cst_12 = arith.constant dense<0.000000e+00> : vector<1x256xf32>
    %16 = tpu.matmul %14, %15, %cst_12 {dimension_numbers = #tpu.dot_dimension_numbers<[1], [0], [0], [1], [0, 0, 1, 1], [], []>} : vector<1x128xf32>, vector<128x256xf32>, vector<1x256xf32> -> vector<1x256xf32>
    %c0_13 = arith.constant 0 : index
    %c0_14 = arith.constant 0 : index
    %17 = vector.load %arg7[%c0_13, %c0_14] : memref<1x256xf32, #tpu.memory_space<vmem>>, vector<1x256xf32>
    %18 = vector.broadcast %17 : vector<1x256xf32> to vector<8x256xf32>
    %19 = arith.addf %8, %18 : vector<8x256xf32>
    %20 = vector.broadcast %16 : vector<1x256xf32> to vector<8x256xf32>
    %21 = arith.addf %19, %20 : vector<8x256xf32>
    %cst_15 = arith.constant 0.000000e+00 : f32
    %22 = vector.broadcast %cst_15 : f32 to vector<8x256xf32>
    %23 = arith.cmpf ogt, %21, %22 : vector<8x256xf32>
    %cst_16 = arith.constant 0.00999999977 : f32
    %24 = vector.broadcast %cst_16 : f32 to vector<8x256xf32>
    %25 = arith.mulf %24, %21 : vector<8x256xf32>
    %26 = arith.select %23, %21, %25 : vector<8x256xi1>, vector<8x256xf32>
    %c0_17 = arith.constant 0 : index
    %c0_18 = arith.constant 0 : index
    %27 = vector.load %arg8[%c0_17, %c0_18] : memref<256x128xf32, #tpu.memory_space<vmem>>, vector<256x128xf32>
    %cst_19 = arith.constant dense<0.000000e+00> : vector<8x128xf32>
    %28 = tpu.matmul %26, %27, %cst_19 {dimension_numbers = #tpu.dot_dimension_numbers<[1], [0], [0], [1], [0, 0, 1, 1], [], []>} : vector<8x256xf32>, vector<256x128xf32>, vector<8x128xf32> -> vector<8x128xf32>
    %c0_20 = arith.constant 0 : index
    %c0_21 = arith.constant 0 : index
    %29 = vector.load %arg9[%c0_20, %c0_21] : memref<1x128xf32, #tpu.memory_space<vmem>>, vector<1x128xf32>
    %30 = vector.broadcast %29 : vector<1x128xf32> to vector<8x128xf32>
    %31 = arith.addf %28, %30 : vector<8x128xf32>
    %c0_22 = arith.constant 0 : index
    %c0_23 = arith.constant 0 : index
    %32 = vector.load %arg10[%c0_22, %c0_23] : memref<8x128xf32, #tpu.memory_space<vmem>>, vector<8x128xf32>
    tpu.vector_store %arg10[%c0_22, %c0_23], %31 {strides = array<i32>} : memref<8x128xf32, #tpu.memory_space<vmem>>, vector<8x128xf32>,
    return
  }
  func.func @transform_0(%arg0: i32) -> (i32, i32) {
    %c0_i32 = arith.constant 0 : i32
    %c0_i32_0 = arith.constant 0 : i32
    return %arg0, %c0_i32 : i32, i32
  }
  func.func @transform_1(%arg0: i32) -> (i32, i32) {
    %c0_i32 = arith.constant 0 : i32
    %c0_i32_0 = arith.constant 0 : i32
    return %arg0, %c0_i32 : i32, i32
  }
  func.func @transform_2(%arg0: i32) -> (i32, i32) {
    %c0_i32 = arith.constant 0 : i32
    %c0_i32_0 = arith.constant 0 : i32
    %c0_i32_1 = arith.constant 0 : i32
    return %c0_i32, %c0_i32_0 : i32, i32
  }
  func.func @transform_3(%arg0: i32) -> (i32, i32) {
    %c0_i32 = arith.constant 0 : i32
    %c0_i32_0 = arith.constant 0 : i32
    %c0_i32_1 = arith.constant 0 : i32
    return %c0_i32, %c0_i32_0 : i32, i32
  }
  func.func @transform_4(%arg0: i32) -> (i32, i32) {
    %c0_i32 = arith.constant 0 : i32
    %c0_i32_0 = arith.constant 0 : i32
    %c0_i32_1 = arith.constant 0 : i32
    return %c0_i32, %c0_i32_0 : i32, i32
  }
  func.func @transform_5(%arg0: i32) -> (i32, i32) {
    %c0_i32 = arith.constant 0 : i32
    %c0_i32_0 = arith.constant 0 : i32
    %c0_i32_1 = arith.constant 0 : i32
    return %c0_i32, %c0_i32_0 : i32, i32
  }
  func.func @transform_6(%arg0: i32) -> (i32, i32) {
    %c0_i32 = arith.constant 0 : i32
    %c0_i32_0 = arith.constant 0 : i32
    %c0_i32_1 = arith.constant 0 : i32
    return %c0_i32, %c0_i32_0 : i32, i32
  }
  func.func @transform_7(%arg0: i32) -> (i32, i32) {
    %c0_i32 = arith.constant 0 : i32
    %c0_i32_0 = arith.constant 0 : i32
    %c0_i32_1 = arith.constant 0 : i32
    return %c0_i32, %c0_i32_0 : i32, i32
  }
  func.func @transform_8(%arg0: i32) -> (i32, i32) {
    %c0_i32 = arith.constant 0 : i32
    %c0_i32_0 = arith.constant 0 : i32
    %c0_i32_1 = arith.constant 0 : i32
    return %c0_i32, %c0_i32_0 : i32, i32
  }
  func.func @transform_9(%arg0: i32) -> (i32, i32) {
    %c0_i32 = arith.constant 0 : i32
    %c0_i32_0 = arith.constant 0 : i32
    return %arg0, %c0_i32 : i32, i32
  }
}

</mosaic_0001>

<llo_original>
// kernel: tpu_custom_call.1
$region0: #{tpu_custom_call.1}
  #allocation0 [shape = 'u32[]', space=smem, size = 0x4, offset = 0x4, fixed_abs, tag = 'smem constant byte address 0x4 - core index']
  #allocation1 [shape = 'u32[144,128]{1,0:T(1,128)}', space=vmem, size = 0x12000, scoped, tag = 'internal scratch']
  %s0 = inlined_call_operand.hbm [shape: f32[8,1], index: 0, kind: input, shape index: {}]
  %s1 = inlined_call_operand.hbm [shape: f32[8,512], index: 1, kind: input, shape index: {}]
  %s2 = inlined_call_operand.hbm [shape: f32[1,100], index: 2, kind: input, shape index: {}]
  %s3 = inlined_call_operand.hbm [shape: f32[1,256], index: 3, kind: input, shape index: {}]
  %s4 = inlined_call_operand.hbm [shape: f32[512,256], index: 4, kind: input, shape index: {}]
  %s5 = inlined_call_operand.hbm [shape: f32[128,256], index: 5, kind: input, shape index: {}]
  %s6 = inlined_call_operand.hbm [shape: f32[1,256], index: 6, kind: input, shape index: {}]
  %s7 = inlined_call_operand.hbm [shape: f32[256,128], index: 7, kind: input, shape index: {}]
  %s8 = inlined_call_operand.hbm [shape: f32[1,128], index: 8, kind: input, shape index: {}]
  %s9 = inlined_call_operand.hbm [shape: f32[8,128], index: 9, kind: output, shape index: {}]
  %s10 = sld [smem:[#allocation0]]
  $region82: #{tpu_custom_call.1} parent=0
    _
  %s12 = ssub.s32 1, %s10
  %s13 = scalar_select 0, %s12, %s10
  $region1: #{tpu_custom_call.1} parent=0
    #allocation2 [shape = 'u8[4096]{0}', space=vmem, size = 0x1000, scoped, tag = 'input window, operand 0, single buffered']
    #allocation3 [shape = 's32[1]{0}', space=sflag, size = 0x4, scoped, tag = 'scoped memory for tpu_custom_call.1']
    #allocation4 [shape = 's32[1]{0}', space=sflag, size = 0x4, scoped, tag = 'scoped memory for tpu_custom_call.1']
    #allocation5 [shape = 'u8[16384]{0}', space=vmem, size = 0x4000, scoped, tag = 'input window, operand 1, single buffered']
    #allocation6 [shape = 's32[1]{0}', space=sflag, size = 0x4, scoped, tag = 'scoped memory for tpu_custom_call.1']
    #allocation7 [shape = 'u8[512]{0}', space=vmem, size = 0x400, scoped, tag = 'input window, operand 2, single buffered']
    #allocation8 [shape = 'u8[1024]{0}', space=vmem, size = 0x400, scoped, tag = 'input window, operand 3, single buffered']
    #allocation9 [shape = 's32[1]{0}', space=sflag, size = 0x4, scoped, tag = 'scoped memory for tpu_custom_call.1']
    #allocation10 [shape = 'u8[524288]{0}', space=vmem, size = 0x80000, scoped, tag = 'input window, operand 4, single buffered']
    #allocation11 [shape = 'u8[131072]{0}', space=vmem, size = 0x20000, scoped, tag = 'input window, operand 5, single buffered']
    #allocation12 [shape = 's32[1]{0}', space=sflag, size = 0x4, scoped, tag = 'scoped memory for tpu_custom_call.1']
    #allocation13 [shape = 'u8[1024]{0}', space=vmem, size = 0x400, scoped, tag = 'input window, operand 6, single buffered']
    #allocation14 [shape = 'u8[131072]{0}', space=vmem, size = 0x20000, scoped, tag = 'input window, operand 7, single buffered']
    #allocation15 [shape = 's32[1]{0}', space=sflag, size = 0x4, scoped, tag = 'scoped memory for tpu_custom_call.1']
    #allocation16 [shape = 'u8[512]{0}', space=vmem, size = 0x400, scoped, tag = 'input window, operand 8, single buffered']
    #allocation17 [shape = 'u8[4096]{0}', space=vmem, size = 0x1000, scoped, tag = 'output window, operand 0, single buffered']
    %14 = vsyncpa [#allocation3], 0
    %15 = vsyncpa [#allocation6], 0
    %16 = vsyncpa [#allocation9], 0
    %17 = vsyncpa [#allocation12], 0
    %18 = vsyncpa [#allocation15], 0
    %19 = vsyncpa [#allocation4], 0
    // Predicated region
    $region2: #{tpu_custom_call.1} parent=1 // pred_check
      _
    $region3: #{tpu_custom_call.1} parent=1 // pred_check_branch
      %21 = sbr.rel (0) target = $region5
    $region4: #{tpu_custom_call.1} parent=1 // pred_region
      %s23 = ssub.s32 128, 128
      %24 = vsyncadd [#allocation3], %s23
      %s26 = sshll.u32 [#allocation2], 4
      %s27 = int_to_ptr.vmem [resolvable:$true] %s26
      %29 = dma.hbm_to_vmem [thread:$0]  %s0, 128, %s27, [#allocation3]
    $region5: #{tpu_custom_call.1} parent=1 // pred_fallthru
      _
    // Predicated region
    $region6: #{tpu_custom_call.1} parent=1 // pred_check
      _
    $region7: #{tpu_custom_call.1} parent=1 // pred_check_branch
      %31 = sbr.rel (0) target = $region9
    $region8: #{tpu_custom_call.1} parent=1 // pred_region
      %s33 = ssub.s32 512, 512
      %34 = vsyncadd [#allocation6], %s33
      %s36 = sshll.u32 [#allocation5], 4
      %s37 = int_to_ptr.vmem [resolvable:$true] %s36
      %39 = dma.hbm_to_vmem [thread:$0]  %s1, 512, %s37, [#allocation6]
    $region9: #{tpu_custom_call.1} parent=1 // pred_fallthru
      _
    // Predicated region
    $region10: #{tpu_custom_call.1} parent=1 // pred_check
      _
    $region11: #{tpu_custom_call.1} parent=1 // pred_check_branch
      %41 = sbr.rel (0) target = $region13
    $region12: #{tpu_custom_call.1} parent=1 // pred_region
      %s43 = ssub.s32 16, 16
      %44 = vsyncadd [#allocation6], %s43
      %s46 = sshll.u32 [#allocation7], 4
      %s47 = int_to_ptr.vmem [resolvable:$true] %s46
      %49 = dma.hbm_to_vmem [thread:$0]  %s2, 16, %s47, [#allocation6]
    $region13: #{tpu_custom_call.1} parent=1 // pred_fallthru
      _
    // Predicated region
    $region14: #{tpu_custom_call.1} parent=1 // pred_check
      _
    $region15: #{tpu_custom_call.1} parent=1 // pred_check_branch
      %51 = sbr.rel (0) target = $region17
    $region16: #{tpu_custom_call.1} parent=1 // pred_region
      %s53 = ssub.s32 32, 32
      %54 = vsyncadd [#allocation9], %s53
      %s56 = sshll.u32 [#allocation8], 4
      %s57 = int_to_ptr.vmem [resolvable:$true] %s56
      %59 = dma.hbm_to_vmem [thread:$0]  %s3, 32, %s57, [#allocation9]
    $region17: #{tpu_custom_call.1} parent=1 // pred_fallthru
      _
    // Predicated region
    $region18: #{tpu_custom_call.1} parent=1 // pred_check
      _
    $region19: #{tpu_custom_call.1} parent=1 // pred_check_branch
      %61 = sbr.rel (0) target = $region21
    $region20: #{tpu_custom_call.1} parent=1 // pred_region
      %s63 = ssub.s32 16384, 16384
      %64 = vsyncadd [#allocation9], %s63
      %s65 = sshll.u32 [#allocation10], 4
      %s66 = int_to_ptr.vmem [resolvable:$true] %s65
      %71 = dma.hbm_to_vmem [thread:$0]  %s4, 16384, %s66, [#allocation9], 256, 256, 16
    $region21: #{tpu_custom_call.1} parent=1 // pred_fallthru
      _
    // Predicated region
    $region22: #{tpu_custom_call.1} parent=1 // pred_check
      _
    $region23: #{tpu_custom_call.1} parent=1 // pred_check_branch
      %73 = sbr.rel (0) target = $region25
    $region24: #{tpu_custom_call.1} parent=1 // pred_region
      %s75 = ssub.s32 4096, 4096
      %76 = vsyncadd [#allocation12], %s75
      %s77 = sshll.u32 [#allocation11], 4
      %s78 = int_to_ptr.vmem [resolvable:$true] %s77
      %83 = dma.hbm_to_vmem [thread:$0]  %s5, 4096, %s78, [#allocation12], 256, 256, 16
    $region25: #{tpu_custom_call.1} parent=1 // pred_fallthru
      _
    // Predicated region
    $region26: #{tpu_custom_call.1} parent=1 // pred_check
      _
    $region27: #{tpu_custom_call.1} parent=1 // pred_check_branch
      %85 = sbr.rel (0) target = $region29
    $region28: #{tpu_custom_call.1} parent=1 // pred_region
      %s87 = ssub.s32 32, 32
      %88 = vsyncadd [#allocation12], %s87
      %s90 = sshll.u32 [#allocation13], 4
      %s91 = int_to_ptr.vmem [resolvable:$true] %s90
      %93 = dma.hbm_to_vmem [thread:$0]  %s6, 32, %s91, [#allocation12]
    $region29: #{tpu_custom_call.1} parent=1 // pred_fallthru
      _
    // Predicated region
    $region30: #{tpu_custom_call.1} parent=1 // pred_check
      _
    $region31: #{tpu_custom_call.1} parent=1 // pred_check_branch
      %95 = sbr.rel (0) target = $region33
    $region32: #{tpu_custom_call.1} parent=1 // pred_region
      %s97 = ssub.s32 4096, 4096
      %98 = vsyncadd [#allocation15], %s97
      %s99 = sshll.u32 [#allocation14], 4
      %s100 = int_to_ptr.vmem [resolvable:$true] %s99
      %105 = dma.hbm_to_vmem [thread:$0]  %s7, 4096, %s100, [#allocation15], 128, 128, 8
    $region33: #{tpu_custom_call.1} parent=1 // pred_fallthru
      _
    // Predicated region
    $region34: #{tpu_custom_call.1} parent=1 // pred_check
      _
    $region35: #{tpu_custom_call.1} parent=1 // pred_check_branch
      %107 = sbr.rel (0) target = $region37
    $region36: #{tpu_custom_call.1} parent=1 // pred_region
      %s109 = ssub.s32 16, 16
      %110 = vsyncadd [#allocation15], %s109
      %s112 = sshll.u32 [#allocation16], 4
      %s113 = int_to_ptr.vmem [resolvable:$true] %s112
      %115 = dma.hbm_to_vmem [thread:$0]  %s8, 16, %s113, [#allocation15]
    $region37: #{tpu_custom_call.1} parent=1 // pred_fallthru
      _
    // Predicated region
    $region38: #{tpu_custom_call.1} parent=1 // pred_check
      _
    $region39: #{tpu_custom_call.1} parent=1 // pred_check_branch
      %117 = sbr.rel (0) target = $region41
    $region40: #{tpu_custom_call.1} parent=1 // pred_region
      %118 = dma.done [#allocation3], 128
    $region41: #{tpu_custom_call.1} parent=1 // pred_fallthru
      _
    // Predicated region
    $region42: #{tpu_custom_call.1} parent=1 // pred_check
      _
    $region43: #{tpu_custom_call.1} parent=1 // pred_check_branch
      %120 = sbr.rel (0) target = $region45
    $region44: #{tpu_custom_call.1} parent=1 // pred_region
      %121 = dma.done [#allocation6], 512
    $region45: #{tpu_custom_call.1} parent=1 // pred_fallthru
      _
    // Predicated region
    $region46: #{tpu_custom_call.1} parent=1 // pred_check
      _
    $region47: #{tpu_custom_call.1} parent=1 // pred_check_branch
      %123 = sbr.rel (0) target = $region49
    $region48: #{tpu_custom_call.1} parent=1 // pred_region
      %124 = dma.done [#allocation6], 16
    $region49: #{tpu_custom_call.1} parent=1 // pred_fallthru
      _
    // Predicated region
    $region50: #{tpu_custom_call.1} parent=1 // pred_check
      _
    $region51: #{tpu_custom_call.1} parent=1 // pred_check_branch
      %126 = sbr.rel (0) target = $region53
    $region52: #{tpu_custom_call.1} parent=1 // pred_region
      %127 = dma.done [#allocation9], 32
    $region53: #{tpu_custom_call.1} parent=1 // pred_fallthru
      _
    // Predicated region
    $region54: #{tpu_custom_call.1} parent=1 // pred_check
      _
    $region55: #{tpu_custom_call.1} parent=1 // pred_check_branch
      %129 = sbr.rel (0) target = $region57
    $region56: #{tpu_custom_call.1} parent=1 // pred_region
      %130 = dma.done [#allocation9], 16384
    $region57: #{tpu_custom_call.1} parent=1 // pred_fallthru
      _
    // Predicated region
    $region58: #{tpu_custom_call.1} parent=1 // pred_check
      _
    $region59: #{tpu_custom_call.1} parent=1 // pred_check_branch
      %132 = sbr.rel (0) target = $region61
    $region60: #{tpu_custom_call.1} parent=1 // pred_region
      %133 = dma.done [#allocation12], 4096
    $region61: #{tpu_custom_call.1} parent=1 // pred_fallthru
      _
    // Predicated region
    $region62: #{tpu_custom_call.1} parent=1 // pred_check
      _
    $region63: #{tpu_custom_call.1} parent=1 // pred_check_branch
      %135 = sbr.rel (0) target = $region65
    $region64: #{tpu_custom_call.1} parent=1 // pred_region
      %136 = dma.done [#allocation12], 32
    $region65: #{tpu_custom_call.1} parent=1 // pred_fallthru
      _
    // Predicated region
    $region66: #{tpu_custom_call.1} parent=1 // pred_check
      _
    $region67: #{tpu_custom_call.1} parent=1 // pred_check_branch
      %138 = sbr.rel (0) target = $region69
    $region68: #{tpu_custom_call.1} parent=1 // pred_region
      %139 = dma.done [#allocation15], 4096
    $region69: #{tpu_custom_call.1} parent=1 // pred_fallthru
      _
    // Predicated region
    $region70: #{tpu_custom_call.1} parent=1 // pred_check
      _
    $region71: #{tpu_custom_call.1} parent=1 // pred_check_branch
      %141 = sbr.rel (0) target = $region73
    $region72: #{tpu_custom_call.1} parent=1 // pred_region
      %142 = dma.done [#allocation15], 16
    $region73: #{tpu_custom_call.1} parent=1 // pred_fallthru
      _
    %v143 = vld [vmem:[#allocation5] sm:$0xff]
    %v144 = vld [vmem:[#allocation5 + $0x8] sm:$0xff]
    %v145 = vld [vmem:[#allocation5 + $0x10] sm:$0xff]
    %v146 = vld [vmem:[#allocation5 + $0x18] sm:$0xff]
    %v147 = vld [vmem:[#allocation10] sm:$0xff]
    %v148 = vld [vmem:[#allocation10 + $0x8] sm:$0xff]
    %v149 = vld [vmem:[#allocation10 + $0x10] sm:$0xff]
    %v150 = vld [vmem:[#allocation10 + $0x18] sm:$0xff]
    %v151 = vld [vmem:[#allocation10 + $0x20] sm:$0xff]
    %v152 = vld [vmem:[#allocation10 + $0x28] sm:$0xff]
    %v153 = vld [vmem:[#allocation10 + $0x30] sm:$0xff]
    %v154 = vld [vmem:[#allocation10 + $0x38] sm:$0xff]
    %v155 = vld [vmem:[#allocation10 + $0x40] sm:$0xff]
    %v156 = vld [vmem:[#allocation10 + $0x48] sm:$0xff]
    %v157 = vld [vmem:[#allocation10 + $0x50] sm:$0xff]
    %v158 = vld [vmem:[#allocation10 + $0x58] sm:$0xff]
    %v159 = vld [vmem:[#allocation10 + $0x60] sm:$0xff]
    %v160 = vld [vmem:[#allocation10 + $0x68] sm:$0xff]
    %v161 = vld [vmem:[#allocation10 + $0x70] sm:$0xff]
    %v162 = vld [vmem:[#allocation10 + $0x78] sm:$0xff]
    %v163 = vld [vmem:[#allocation10 + $0x80] sm:$0xff]
    %v164 = vld [vmem:[#allocation10 + $0x88] sm:$0xff]
    %v165 = vld [vmem:[#allocation10 + $0x90] sm:$0xff]
    %v166 = vld [vmem:[#allocation10 + $0x98] sm:$0xff]
    %v167 = vld [vmem:[#allocation10 + $0xa0] sm:$0xff]
    %v168 = vld [vmem:[#allocation10 + $0xa8] sm:$0xff]
    %v169 = vld [vmem:[#allocation10 + $0xb0] sm:$0xff]
    %v170 = vld [vmem:[#allocation10 + $0xb8] sm:$0xff]
    %v171 = vld [vmem:[#allocation10 + $0xc0] sm:$0xff]
    %v172 = vld [vmem:[#allocation10 + $0xc8] sm:$0xff]
    %v173 = vld [vmem:[#allocation10 + $0xd0] sm:$0xff]
    %v174 = vld [vmem:[#allocation10 + $0xd8] sm:$0xff]
    %v175 = vld [vmem:[#allocation10 + $0xe0] sm:$0xff]
    %v176 = vld [vmem:[#allocation10 + $0xe8] sm:$0xff]
    %v177 = vld [vmem:[#allocation10 + $0xf0] sm:$0xff]
    %v178 = vld [vmem:[#allocation10 + $0xf8] sm:$0xff]
    %v179 = vld [vmem:[#allocation10 + $0x100] sm:$0xff]
    %v180 = vld [vmem:[#allocation10 + $0x108] sm:$0xff]
    %v181 = vld [vmem:[#allocation10 + $0x110] sm:$0xff]
    %v182 = vld [vmem:[#allocation10 + $0x118] sm:$0xff]
    %v183 = vld [vmem:[#allocation10 + $0x120] sm:$0xff]
    %v184 = vld [vmem:[#allocation10 + $0x128] sm:$0xff]
    %v185 = vld [vmem:[#allocation10 + $0x130] sm:$0xff]
    %v186 = vld [vmem:[#allocation10 + $0x138] sm:$0xff]
    %v187 = vld [vmem:[#allocation10 + $0x140] sm:$0xff]
    %v188 = vld [vmem:[#allocation10 + $0x148] sm:$0xff]
    %v189 = vld [vmem:[#allocation10 + $0x150] sm:$0xff]
    %v190 = vld [vmem:[#allocation10 + $0x158] sm:$0xff]
    %v191 = vld [vmem:[#allocation10 + $0x160] sm:$0xff]
    %v192 = vld [vmem:[#allocation10 + $0x168] sm:$0xff]
    %v193 = vld [vmem:[#allocation10 + $0x170] sm:$0xff]
    %v194 = vld [vmem:[#allocation10 + $0x178] sm:$0xff]
    %v195 = vld [vmem:[#allocation10 + $0x180] sm:$0xff]
    %v196 = vld [vmem:[#allocation10 + $0x188] sm:$0xff]
    %v197 = vld [vmem:[#allocation10 + $0x190] sm:$0xff]
    %v198 = vld [vmem:[#allocation10 + $0x198] sm:$0xff]
    %v199 = vld [vmem:[#allocation10 + $0x1a0] sm:$0xff]
    %v200 = vld [vmem:[#allocation10 + $0x1a8] sm:$0xff]
    %v201 = vld [vmem:[#allocation10 + $0x1b0] sm:$0xff]
    %v202 = vld [vmem:[#allocation10 + $0x1b8] sm:$0xff]
    %v203 = vld [vmem:[#allocation10 + $0x1c0] sm:$0xff]
    %v204 = vld [vmem:[#allocation10 + $0x1c8] sm:$0xff]
    %v205 = vld [vmem:[#allocation10 + $0x1d0] sm:$0xff]
    %v206 = vld [vmem:[#allocation10 + $0x1d8] sm:$0xff]
    %v207 = vld [vmem:[#allocation10 + $0x1e0] sm:$0xff]
    %v208 = vld [vmem:[#allocation10 + $0x1e8] sm:$0xff]
    %v209 = vld [vmem:[#allocation10 + $0x1f0] sm:$0xff]
    %v210 = vld [vmem:[#allocation10 + $0x1f8] sm:$0xff]
    %v211 = vld [vmem:[#allocation10 + $0x200] sm:$0xff]
    %v212 = vld [vmem:[#allocation10 + $0x208] sm:$0xff]
    %v213 = vld [vmem:[#allocation10 + $0x210] sm:$0xff]
    %v214 = vld [vmem:[#allocation10 + $0x218] sm:$0xff]
    %v215 = vld [vmem:[#allocation10 + $0x220] sm:$0xff]
    %v216 = vld [vmem:[#allocation10 + $0x228] sm:$0xff]
    %v217 = vld [vmem:[#allocation10 + $0x230] sm:$0xff]
    %v218 = vld [vmem:[#allocation10 + $0x238] sm:$0xff]
    %v219 = vld [vmem:[#allocation10 + $0x240] sm:$0xff]
    %v220 = vld [vmem:[#allocation10 + $0x248] sm:$0xff]
    %v221 = vld [vmem:[#allocation10 + $0x250] sm:$0xff]
    %v222 = vld [vmem:[#allocation10 + $0x258] sm:$0xff]
    %v223 = vld [vmem:[#allocation10 + $0x260] sm:$0xff]
    %v224 = vld [vmem:[#allocation10 + $0x268] sm:$0xff]
    %v225 = vld [vmem:[#allocation10 + $0x270] sm:$0xff]
    %v226 = vld [vmem:[#allocation10 + $0x278] sm:$0xff]
    %v227 = vld [vmem:[#allocation10 + $0x280] sm:$0xff]
    %v228 = vld [vmem:[#allocation10 + $0x288] sm:$0xff]
    %v229 = vld [vmem:[#allocation10 + $0x290] sm:$0xff]
    %v230 = vld [vmem:[#allocation10 + $0x298] sm:$0xff]
    %v231 = vld [vmem:[#allocation10 + $0x2a0] sm:$0xff]
    %v232 = vld [vmem:[#allocation10 + $0x2a8] sm:$0xff]
    %v233 = vld [vmem:[#allocation10 + $0x2b0] sm:$0xff]
    %v234 = vld [vmem:[#allocation10 + $0x2b8] sm:$0xff]
    %v235 = vld [vmem:[#allocation10 + $0x2c0] sm:$0xff]
    %v236 = vld [vmem:[#allocation10 + $0x2c8] sm:$0xff]
    %v237 = vld [vmem:[#allocation10 + $0x2d0] sm:$0xff]
    %v238 = vld [vmem:[#allocation10 + $0x2d8] sm:$0xff]
    %v239 = vld [vmem:[#allocation10 + $0x2e0] sm:$0xff]
    %v240 = vld [vmem:[#allocation10 + $0x2e8] sm:$0xff]
    %v241 = vld [vmem:[#allocation10 + $0x2f0] sm:$0xff]
    %v242 = vld [vmem:[#allocation10 + $0x2f8] sm:$0xff]
    %v243 = vld [vmem:[#allocation10 + $0x300] sm:$0xff]
    %v244 = vld [vmem:[#allocation10 + $0x308] sm:$0xff]
    %v245 = vld [vmem:[#allocation10 + $0x310] sm:$0xff]
    %v246 = vld [vmem:[#allocation10 + $0x318] sm:$0xff]
    %v247 = vld [vmem:[#allocation10 + $0x320] sm:$0xff]
    %v248 = vld [vmem:[#allocation10 + $0x328] sm:$0xff]
    %v249 = vld [vmem:[#allocation10 + $0x330] sm:$0xff]
    %v250 = vld [vmem:[#allocation10 + $0x338] sm:$0xff]
    %v251 = vld [vmem:[#allocation10 + $0x340] sm:$0xff]
    %v252 = vld [vmem:[#allocation10 + $0x348] sm:$0xff]
    %v253 = vld [vmem:[#allocation10 + $0x350] sm:$0xff]
    %v254 = vld [vmem:[#allocation10 + $0x358] sm:$0xff]
    %v255 = vld [vmem:[#allocation10 + $0x360] sm:$0xff]
    %v256 = vld [vmem:[#allocation10 + $0x368] sm:$0xff]
    %v257 = vld [vmem:[#allocation10 + $0x370] sm:$0xff]
    %v258 = vld [vmem:[#allocation10 + $0x378] sm:$0xff]
    %v259 = vld [vmem:[#allocation10 + $0x380] sm:$0xff]
    %v260 = vld [vmem:[#allocation10 + $0x388] sm:$0xff]
    %v261 = vld [vmem:[#allocation10 + $0x390] sm:$0xff]
    %v262 = vld [vmem:[#allocation10 + $0x398] sm:$0xff]
    %v263 = vld [vmem:[#allocation10 + $0x3a0] sm:$0xff]
    %v264 = vld [vmem:[#allocation10 + $0x3a8] sm:$0xff]
    %v265 = vld [vmem:[#allocation10 + $0x3b0] sm:$0xff]
    %v266 = vld [vmem:[#allocation10 + $0x3b8] sm:$0xff]
    %v267 = vld [vmem:[#allocation10 + $0x3c0] sm:$0xff]
    %v268 = vld [vmem:[#allocation10 + $0x3c8] sm:$0xff]
    %v269 = vld [vmem:[#allocation10 + $0x3d0] sm:$0xff]
    %v270 = vld [vmem:[#allocation10 + $0x3d8] sm:$0xff]
    %v271 = vld [vmem:[#allocation10 + $0x3e0] sm:$0xff]
    %v272 = vld [vmem:[#allocation10 + $0x3e8] sm:$0xff]
    %v273 = vld [vmem:[#allocation10 + $0x3f0] sm:$0xff]
    %v274 = vld [vmem:[#allocation10 + $0x3f8] sm:$0xff]
    %v275 = vld [vmem:[#allocation2] sm:$0xff]
    %v276 = vld [vmem:[#allocation8] sm:$0x3]
    %278 = vset.pattern.permute.xlu0 0
    %279 = vperm.xlu0 %278, %v275
    %v280 = vpop.permute.xlu0 %279
    %v283 = vlaneseq
    %v284 = vshrl.u32 %v283, 7
    %v285 = vsub.s32 0, %v284
    %v286 = vrot.slane %v276, %v285
    %v287 = vlaneseq
    %v288 = vshrl.u32 %v287, 7
    %v289 = vsub.s32 1, %v288
    %v290 = vrot.slane %v276, %v289
    %v293 = vmul.f32 %v280, %v286
    %v294 = vmul.f32 %v280, %v290
    %295 = vmatprep.subr.mxu0 %v148
    %296 = vmatpush1.msra.mxu0 %v147
    %297 = vmatprep.subr.mxu0 %v150
    %298 = vmatpush1.msra.mxu0 %v149
    %299 = vmatprep.subr.mxu0 %v152
    %300 = vmatpush1.msra.mxu0 %v151
    %301 = vmatprep.subr.mxu0 %v154
    %302 = vmatpush1.msra.mxu0 %v153
    %303 = vmatprep.subr.mxu0 %v156
    %304 = vmatpush1.msra.mxu0 %v155
    %305 = vmatprep.subr.mxu0 %v158
    %306 = vmatpush1.msra.mxu0 %v157
    %307 = vmatprep.subr.mxu0 %v160
    %308 = vmatpush1.msra.mxu0 %v159
    %309 = vmatprep.subr.mxu0 %v162
    %310 = vmatpush1.msra.mxu0 %v161
    %311 = vmatprep.subr.mxu0 %v164
    %312 = vmatpush1.msra.mxu0 %v163
    %313 = vmatprep.subr.mxu0 %v166
    %314 = vmatpush1.msra.mxu0 %v165
    %315 = vmatprep.subr.mxu0 %v168
    %316 = vmatpush1.msra.mxu0 %v167
    %317 = vmatprep.subr.mxu0 %v170
    %318 = vmatpush1.msra.mxu0 %v169
    %319 = vmatprep.subr.mxu0 %v172
    %320 = vmatpush1.msra.mxu0 %v171
    %321 = vmatprep.subr.mxu0 %v174
    %322 = vmatpush1.msra.mxu0 %v173
    %323 = vmatprep.subr.mxu0 %v176
    %324 = vmatpush1.msra.mxu0 %v175
    %325 = vmatprep.subr.mxu0 %v178
    %326 = vmatpush1.msra.mxu0 %v177
    %327 = vmatprep.subr.mxu0 %v180
    %328 = vmatpush1.msra.mxu0 %v179
    %329 = vmatprep.subr.mxu0 %v182
    %330 = vmatpush1.msra.mxu0 %v181
    %331 = vmatprep.subr.mxu0 %v184
    %332 = vmatpush1.msra.mxu0 %v183
    %333 = vmatprep.subr.mxu0 %v186
    %334 = vmatpush1.msra.mxu0 %v185
    %335 = vmatprep.subr.mxu0 %v188
    %336 = vmatpush1.msra.mxu0 %v187
    %337 = vmatprep.subr.mxu0 %v190
    %338 = vmatpush1.msra.mxu0 %v189
    %339 = vmatprep.subr.mxu0 %v192
    %340 = vmatpush1.msra.mxu0 %v191
    %341 = vmatprep.subr.mxu0 %v194
    %342 = vmatpush1.msra.mxu0 %v193
    %343 = vmatprep.subr.mxu0 %v196
    %344 = vmatpush1.msra.mxu0 %v195
    %345 = vmatprep.subr.mxu0 %v198
    %346 = vmatpush1.msra.mxu0 %v197
    %347 = vmatprep.subr.mxu0 %v200
    %348 = vmatpush1.msra.mxu0 %v199
    %349 = vmatprep.subr.mxu0 %v202
    %350 = vmatpush1.msra.mxu0 %v201
    %351 = vmatprep.subr.mxu0 %v204
    %352 = vmatpush1.msra.mxu0 %v203
    %353 = vmatprep.subr.mxu0 %v206
    %354 = vmatpush1.msra.mxu0 %v205
    %355 = vmatprep.subr.mxu0 %v208
    %356 = vmatpush1.msra.mxu0 %v207
    %357 = vmatprep.subr.mxu0 %v210
    %358 = vmatpush1.msra.mxu0 %v209
    %359 = vmatprep.mubr.f32.mxu0 %v144
    %360 = vmatmul.mubr.f32.gmra.mrb[0].mxu0 %v143
    %v361 = vpop.f32.mrb[0].mxu0
    %v362 = vadd.f32 %v293, %v361
    %v363 = vpop.f32.mrb[0].mxu0
    %v364 = vadd.f32 %v294, %v363
    %365 = vdwg.mxu0
    %366 = vmatprep.subr.mxu0 %v212
    %367 = vmatpush1.msra.mxu0 %v211
    %368 = vmatprep.subr.mxu0 %v214
    %369 = vmatpush1.msra.mxu0 %v213
    %370 = vmatprep.subr.mxu0 %v216
    %371 = vmatpush1.msra.mxu0 %v215
    %372 = vmatprep.subr.mxu0 %v218
    %373 = vmatpush1.msra.mxu0 %v217
    %374 = vmatprep.subr.mxu0 %v220
    %375 = vmatpush1.msra.mxu0 %v219
    %376 = vmatprep.subr.mxu0 %v222
    %377 = vmatpush1.msra.mxu0 %v221
    %378 = vmatprep.subr.mxu0 %v224
    %379 = vmatpush1.msra.mxu0 %v223
    %380 = vmatprep.subr.mxu0 %v226
    %381 = vmatpush1.msra.mxu0 %v225
    %382 = vmatprep.subr.mxu0 %v228
    %383 = vmatpush1.msra.mxu0 %v227
    %384 = vmatprep.subr.mxu0 %v230
    %385 = vmatpush1.msra.mxu0 %v229
    %386 = vmatprep.subr.mxu0 %v232
    %387 = vmatpush1.msra.mxu0 %v231
    %388 = vmatprep.subr.mxu0 %v234
    %389 = vmatpush1.msra.mxu0 %v233
    %390 = vmatprep.subr.mxu0 %v236
    %391 = vmatpush1.msra.mxu0 %v235
    %392 = vmatprep.subr.mxu0 %v238
    %393 = vmatpush1.msra.mxu0 %v237
    %394 = vmatprep.subr.mxu0 %v240
    %395 = vmatpush1.msra.mxu0 %v239
    %396 = vmatprep.subr.mxu0 %v242
    %397 = vmatpush1.msra.mxu0 %v241
    %398 = vmatprep.subr.mxu0 %v244
    %399 = vmatpush1.msra.mxu0 %v243
    %400 = vmatprep.subr.mxu0 %v246
    %401 = vmatpush1.msra.mxu0 %v245
    %402 = vmatprep.subr.mxu0 %v248
    %403 = vmatpush1.msra.mxu0 %v247
    %404 = vmatprep.subr.mxu0 %v250
    %405 = vmatpush1.msra.mxu0 %v249
    %406 = vmatprep.subr.mxu0 %v252
    %407 = vmatpush1.msra.mxu0 %v251
    %408 = vmatprep.subr.mxu0 %v254
    %409 = vmatpush1.msra.mxu0 %v253
    %410 = vmatprep.subr.mxu0 %v256
    %411 = vmatpush1.msra.mxu0 %v255
    %412 = vmatprep.subr.mxu0 %v258
    %413 = vmatpush1.msra.mxu0 %v257
    %414 = vmatprep.subr.mxu0 %v260
    %415 = vmatpush1.msra.mxu0 %v259
    %416 = vmatprep.subr.mxu0 %v262
    %417 = vmatpush1.msra.mxu0 %v261
    %418 = vmatprep.subr.mxu0 %v264
    %419 = vmatpush1.msra.mxu0 %v263
    %420 = vmatprep.subr.mxu0 %v266
    %421 = vmatpush1.msra.mxu0 %v265
    %422 = vmatprep.subr.mxu0 %v268
    %423 = vmatpush1.msra.mxu0 %v267
    %424 = vmatprep.subr.mxu0 %v270
    %425 = vmatpush1.msra.mxu0 %v269
    %426 = vmatprep.subr.mxu0 %v272
    %427 = vmatpush1.msra.mxu0 %v271
    %428 = vmatprep.subr.mxu0 %v274
    %429 = vmatpush1.msra.mxu0 %v273
    %430 = vmatprep.mubr.f32.mxu0 %v146
    %431 = vmatmul.mubr.f32.gmra.mrb[0].mxu0 %v145
    %v432 = vpop.f32.mrb[0].mxu0
    %v433 = vadd.f32 %v362, %v432
    %v434 = vpop.f32.mrb[0].mxu0
    %v435 = vadd.f32 %v364, %v434
    %436 = vdwg.mxu0
    %v437 = vlaneseq
    %v438 = vand.u32 %v437, 127
    %vm439 = vcmp.lt.s32.totalorder %v438, 100
    %v440 = vld [vmem:[#allocation7] sm:$0x1]
    %v441 = vsel %vm439, %v440, 0.0
    %v442 = vld [vmem:[#allocation11] sm:$0xff]
    %v443 = vld [vmem:[#allocation11 + $0x8] sm:$0xff]
    %v444 = vld [vmem:[#allocation11 + $0x10] sm:$0xff]
    %v445 = vld [vmem:[#allocation11 + $0x18] sm:$0xff]
    %v446 = vld [vmem:[#allocation11 + $0x20] sm:$0xff]
    %v447 = vld [vmem:[#allocation11 + $0x28] sm:$0xff]
    %v448 = vld [vmem:[#allocation11 + $0x30] sm:$0xff]
    %v449 = vld [vmem:[#allocation11 + $0x38] sm:$0xff]
    %v450 = vld [vmem:[#allocation11 + $0x40] sm:$0xff]
    %v451 = vld [vmem:[#allocation11 + $0x48] sm:$0xff]
    %v452 = vld [vmem:[#allocation11 + $0x50] sm:$0xff]
    %v453 = vld [vmem:[#allocation11 + $0x58] sm:$0xff]
    %v454 = vld [vmem:[#allocation11 + $0x60] sm:$0xff]
    %v455 = vld [vmem:[#allocation11 + $0x68] sm:$0xff]
    %v456 = vld [vmem:[#allocation11 + $0x70] sm:$0xff]
    %v457 = vld [vmem:[#allocation11 + $0x78] sm:$0xff]
    %v458 = vld [vmem:[#allocation11 + $0x80] sm:$0xff]
    %v459 = vld [vmem:[#allocation11 + $0x88] sm:$0xff]
    %v460 = vld [vmem:[#allocation11 + $0x90] sm:$0xff]
    %v461 = vld [vmem:[#allocation11 + $0x98] sm:$0xff]
    %v462 = vld [vmem:[#allocation11 + $0xa0] sm:$0xff]
    %v463 = vld [vmem:[#allocation11 + $0xa8] sm:$0xff]
    %v464 = vld [vmem:[#allocation11 + $0xb0] sm:$0xff]
    %v465 = vld [vmem:[#allocation11 + $0xb8] sm:$0xff]
    %v466 = vld [vmem:[#allocation11 + $0xc0] sm:$0xff]
    %v467 = vld [vmem:[#allocation11 + $0xc8] sm:$0xff]
    %v468 = vld [vmem:[#allocation11 + $0xd0] sm:$0xff]
    %v469 = vld [vmem:[#allocation11 + $0xd8] sm:$0xff]
    %v470 = vld [vmem:[#allocation11 + $0xe0] sm:$0xff]
    %v471 = vld [vmem:[#allocation11 + $0xe8] sm:$0xff]
    %v472 = vld [vmem:[#allocation11 + $0xf0] sm:$0xff]
    %v473 = vld [vmem:[#allocation11 + $0xf8] sm:$0xff]
    %474 = vmatprep.subr.mxu0 %v443
    %475 = vmatpush1.msra.mxu0 %v442
    %476 = vmatprep.subr.mxu0 %v445
    %477 = vmatpush1.msra.mxu0 %v444
    %478 = vmatprep.subr.mxu0 %v447
    %479 = vmatpush1.msra.mxu0 %v446
    %480 = vmatprep.subr.mxu0 %v449
    %481 = vmatpush1.msra.mxu0 %v448
    %482 = vmatprep.subr.mxu0 %v451
    %483 = vmatpush1.msra.mxu0 %v450
    %484 = vmatprep.subr.mxu0 %v453
    %485 = vmatpush1.msra.mxu0 %v452
    %486 = vmatprep.subr.mxu0 %v455
    %487 = vmatpush1.msra.mxu0 %v454
    %488 = vmatprep.subr.mxu0 %v457
    %489 = vmatpush1.msra.mxu0 %v456
    %490 = vmatprep.subr.mxu0 %v459
    %491 = vmatpush1.msra.mxu0 %v458
    %492 = vmatprep.subr.mxu0 %v461
    %493 = vmatpush1.msra.mxu0 %v460
    %494 = vmatprep.subr.mxu0 %v463
    %495 = vmatpush1.msra.mxu0 %v462
    %496 = vmatprep.subr.mxu0 %v465
    %497 = vmatpush1.msra.mxu0 %v464
    %498 = vmatprep.subr.mxu0 %v467
    %499 = vmatpush1.msra.mxu0 %v466
    %500 = vmatprep.subr.mxu0 %v469
    %501 = vmatpush1.msra.mxu0 %v468
    %502 = vmatprep.subr.mxu0 %v471
    %503 = vmatpush1.msra.mxu0 %v470
    %504 = vmatprep.subr.mxu0 %v473
    %505 = vmatpush1.msra.mxu0 %v472
    %506 = vmatprep.subr.mxu0 0.0
    %507 = vmatpush1.msra.mxu0 0.0
    %508 = vmatprep.subr.mxu0 0.0
    %509 = vmatpush1.msra.mxu0 0.0
    %510 = vmatprep.subr.mxu0 0.0
    %511 = vmatpush1.msra.mxu0 0.0
    %512 = vmatprep.subr.mxu0 0.0
    %513 = vmatpush1.msra.mxu0 0.0
    %514 = vmatprep.subr.mxu0 0.0
    %515 = vmatpush1.msra.mxu0 0.0
    %516 = vmatprep.subr.mxu0 0.0
    %517 = vmatpush1.msra.mxu0 0.0
    %518 = vmatprep.subr.mxu0 0.0
    %519 = vmatpush1.msra.mxu0 0.0
    %520 = vmatprep.subr.mxu0 0.0
    %521 = vmatpush1.msra.mxu0 0.0
    %522 = vmatprep.subr.mxu0 0.0
    %523 = vmatpush1.msra.mxu0 0.0
    %524 = vmatprep.subr.mxu0 0.0
    %525 = vmatpush1.msra.mxu0 0.0
    %526 = vmatprep.subr.mxu0 0.0
    %527 = vmatpush1.msra.mxu0 0.0
    %528 = vmatprep.subr.mxu0 0.0
    %529 = vmatpush1.msra.mxu0 0.0
    %530 = vmatprep.subr.mxu0 0.0
    %531 = vmatpush1.msra.mxu0 0.0
    %532 = vmatprep.subr.mxu0 0.0
    %533 = vmatpush1.msra.mxu0 0.0
    %534 = vmatprep.subr.mxu0 0.0
    %535 = vmatpush1.msra.mxu0 0.0
    %536 = vmatprep.subr.mxu0 0.0
    %537 = vmatpush1.msra.mxu0 0.0
    %538 = vmatprep.mubr.f32.mxu0 0.0
    %539 = vmatmul.mubr.f32.gmra.mrb[0].mxu0 %v441
    %v540 = vpop.f32.mrb[0].mxu0
    %v541 = vadd.f32 0.0, %v540
    %v542 = vpop.f32.mrb[0].mxu0
    %v543 = vadd.f32 0.0, %v542
    %544 = vdwg.mxu0
    %v545 = vld [vmem:[#allocation13] sm:$0x3]
    %v547 = vlaneseq
    %v548 = vshrl.u32 %v547, 7
    %v549 = vsub.s32 0, %v548
    %v550 = vrot.slane %v545, %v549
    %v551 = vlaneseq
    %v552 = vshrl.u32 %v551, 7
    %v553 = vsub.s32 1, %v552
    %v554 = vrot.slane %v545, %v553
    %v557 = vadd.f32 %v433, %v550
    %v558 = vadd.f32 %v435, %v554
    %v559 = vlaneseq
    %v560 = vshrl.u32 %v559, 7
    %v561 = vsub.s32 0, %v560
    %v562 = vrot.slane %v541, %v561
    %v563 = vlaneseq
    %v564 = vshrl.u32 %v563, 7
    %v565 = vsub.s32 0, %v564
    %v566 = vrot.slane %v543, %v565
    %v567 = vadd.f32 %v557, %v562
    %v568 = vadd.f32 %v558, %v566
    %vm569 = vcmp.gt.f32.partialorder %v567, 0.0
    %vm570 = vcmp.gt.f32.partialorder %v568, 0.0
    %v571 = vmul.f32 %v567, 0.01
    %v572 = vmul.f32 %v568, 0.01
    %v573 = vsel %vm569, %v567, %v571
    %v574 = vsel %vm570, %v568, %v572
    %v575 = vld [vmem:[#allocation14] sm:$0xff]
    %v576 = vld [vmem:[#allocation14 + $0x8] sm:$0xff]
    %v577 = vld [vmem:[#allocation14 + $0x10] sm:$0xff]
    %v578 = vld [vmem:[#allocation14 + $0x18] sm:$0xff]
    %v579 = vld [vmem:[#allocation14 + $0x20] sm:$0xff]
    %v580 = vld [vmem:[#allocation14 + $0x28] sm:$0xff]
    %v581 = vld [vmem:[#allocation14 + $0x30] sm:$0xff]
    %v582 = vld [vmem:[#allocation14 + $0x38] sm:$0xff]
    %v583 = vld [vmem:[#allocation14 + $0x40] sm:$0xff]
    %v584 = vld [vmem:[#allocation14 + $0x48] sm:$0xff]
    %v585 = vld [vmem:[#allocation14 + $0x50] sm:$0xff]
    %v586 = vld [vmem:[#allocation14 + $0x58] sm:$0xff]
    %v587 = vld [vmem:[#allocation14 + $0x60] sm:$0xff]
    %v588 = vld [vmem:[#allocation14 + $0x68] sm:$0xff]
    %v589 = vld [vmem:[#allocation14 + $0x70] sm:$0xff]
    %v590 = vld [vmem:[#allocation14 + $0x78] sm:$0xff]
    %v591 = vld [vmem:[#allocation14 + $0x80] sm:$0xff]
    %v592 = vld [vmem:[#allocation14 + $0x88] sm:$0xff]
    %v593 = vld [vmem:[#allocation14 + $0x90] sm:$0xff]
    %v594 = vld [vmem:[#allocation14 + $0x98] sm:$0xff]
    %v595 = vld [vmem:[#allocation14 + $0xa0] sm:$0xff]
    %v596 = vld [vmem:[#allocation14 + $0xa8] sm:$0xff]
    %v597 = vld [vmem:[#allocation14 + $0xb0] sm:$0xff]
    %v598 = vld [vmem:[#allocation14 + $0xb8] sm:$0xff]
    %v599 = vld [vmem:[#allocation14 + $0xc0] sm:$0xff]
    %v600 = vld [vmem:[#allocation14 + $0xc8] sm:$0xff]
    %v601 = vld [vmem:[#allocation14 + $0xd0] sm:$0xff]
    %v602 = vld [vmem:[#allocation14 + $0xd8] sm:$0xff]
    %v603 = vld [vmem:[#allocation14 + $0xe0] sm:$0xff]
    %v604 = vld [vmem:[#allocation14 + $0xe8] sm:$0xff]
    %v605 = vld [vmem:[#allocation14 + $0xf0] sm:$0xff]
    %v606 = vld [vmem:[#allocation14 + $0xf8] sm:$0xff]
    %v607 = vld [vmem:[#allocation16] sm:$0x1]
    %v609 = vlaneseq
    %v610 = vshrl.u32 %v609, 7
    %v611 = vsub.s32 0, %v610
    %v612 = vrot.slane %v607, %v611
    %614 = vmatprep.subr.mxu0 0.0
    %615 = vmatpush1.msra.mxu0 %v575
    %616 = vmatprep.subr.mxu0 0.0
    %617 = vmatpush1.msra.mxu0 %v576
    %618 = vmatprep.subr.mxu0 0.0
    %619 = vmatpush1.msra.mxu0 %v577
    %620 = vmatprep.subr.mxu0 0.0
    %621 = vmatpush1.msra.mxu0 %v578
    %622 = vmatprep.subr.mxu0 0.0
    %623 = vmatpush1.msra.mxu0 %v579
    %624 = vmatprep.subr.mxu0 0.0
    %625 = vmatpush1.msra.mxu0 %v580
    %626 = vmatprep.subr.mxu0 0.0
    %627 = vmatpush1.msra.mxu0 %v581
    %628 = vmatprep.subr.mxu0 0.0
    %629 = vmatpush1.msra.mxu0 %v582
    %630 = vmatprep.subr.mxu0 0.0
    %631 = vmatpush1.msra.mxu0 %v583
    %632 = vmatprep.subr.mxu0 0.0
    %633 = vmatpush1.msra.mxu0 %v584
    %634 = vmatprep.subr.mxu0 0.0
    %635 = vmatpush1.msra.mxu0 %v585
    %636 = vmatprep.subr.mxu0 0.0
    %637 = vmatpush1.msra.mxu0 %v586
    %638 = vmatprep.subr.mxu0 0.0
    %639 = vmatpush1.msra.mxu0 %v587
    %640 = vmatprep.subr.mxu0 0.0
    %641 = vmatpush1.msra.mxu0 %v588
    %642 = vmatprep.subr.mxu0 0.0
    %643 = vmatpush1.msra.mxu0 %v589
    %644 = vmatprep.subr.mxu0 0.0
    %645 = vmatpush1.msra.mxu0 %v590
    %646 = vmatprep.subr.mxu0 0.0
    %647 = vmatpush1.msra.mxu0 %v591
    %648 = vmatprep.subr.mxu0 0.0
    %649 = vmatpush1.msra.mxu0 %v592
    %650 = vmatprep.subr.mxu0 0.0
    %651 = vmatpush1.msra.mxu0 %v593
    %652 = vmatprep.subr.mxu0 0.0
    %653 = vmatpush1.msra.mxu0 %v594
    %654 = vmatprep.subr.mxu0 0.0
    %655 = vmatpush1.msra.mxu0 %v595
    %656 = vmatprep.subr.mxu0 0.0
    %657 = vmatpush1.msra.mxu0 %v596
    %658 = vmatprep.subr.mxu0 0.0
    %659 = vmatpush1.msra.mxu0 %v597
    %660 = vmatprep.subr.mxu0 0.0
    %661 = vmatpush1.msra.mxu0 %v598
    %662 = vmatprep.subr.mxu0 0.0
    %663 = vmatpush1.msra.mxu0 %v599
    %664 = vmatprep.subr.mxu0 0.0
    %665 = vmatpush1.msra.mxu0 %v600
    %666 = vmatprep.subr.mxu0 0.0
    %667 = vmatpush1.msra.mxu0 %v601
    %668 = vmatprep.subr.mxu0 0.0
    %669 = vmatpush1.msra.mxu0 %v602
    %670 = vmatprep.subr.mxu0 0.0
    %671 = vmatpush1.msra.mxu0 %v603
    %672 = vmatprep.subr.mxu0 0.0
    %673 = vmatpush1.msra.mxu0 %v604
    %674 = vmatprep.subr.mxu0 0.0
    %675 = vmatpush1.msra.mxu0 %v605
    %676 = vmatprep.subr.mxu0 0.0
    %677 = vmatpush1.msra.mxu0 %v606
    %678 = vmatprep.mubr.f32.mxu0 %v574
    %679 = vmatmul.mubr.f32.gmra.mrb[0].mxu0 %v573
    %v680 = vpop.f32.mrb[0].mxu0
    %v681 = vadd.f32 %v612, %v680
    %v682 = vpop.f32.mrb[0].mxu0
    %683 = vdwg.mxu0
    %684 = vst [vmem:[#allocation17] sm:$0xff] %v681
    // Predicated region
    $region74: #{tpu_custom_call.1} parent=1 // pred_check
      _
    $region75: #{tpu_custom_call.1} parent=1 // pred_check_branch
      %686 = sbr.rel (0) target = $region77
    $region76: #{tpu_custom_call.1} parent=1 // pred_region
      %s688 = ssub.s32 128, 128
      %689 = vsyncadd [#allocation4], %s688
      %s691 = sshll.u32 [#allocation17], 4
      %s692 = int_to_ptr.vmem [resolvable:$true] %s691
      %694 = dma.vmem_to_hbm [thread:$0]  %s692, 128, %s9, [#allocation4]
    $region77: #{tpu_custom_call.1} parent=1 // pred_fallthru
      _
    // Predicated region
    $region78: #{tpu_custom_call.1} parent=1 // pred_check
      _
    $region79: #{tpu_custom_call.1} parent=1 // pred_check_branch
      %696 = sbr.rel (0) target = $region81
    $region80: #{tpu_custom_call.1} parent=1 // pred_region
      %697 = dma.done [#allocation4], 128
    $region81: #{tpu_custom_call.1} parent=1 // pred_fallthru
      _
    %698 = vsyncpa [#allocation3], 1
    %699 = vsyncpa [#allocation6], 1
    %700 = vsyncpa [#allocation9], 1
    %701 = vsyncpa [#allocation12], 1
    %702 = vsyncpa [#allocation15], 1
    %703 = vsyncpa [#allocation4], 1

// kernel: tpu_custom_call.1
$region0: #{tpu_custom_call.1}
  #allocation0 [shape = 'u32[]', space=smem, size = 0x4, offset = 0x4, fixed_abs, tag = 'smem constant byte address 0x4 - core index']
  #allocation1 [shape = 'u32[144,128]{1,0:T(1,128)}', space=vmem, size = 0x12000, scoped, tag = 'internal scratch']
  %s0 = inlined_call_operand.hbm [shape: f32[8,1], index: 0, kind: input, shape index: {}]
  %s1 = inlined_call_operand.hbm [shape: f32[8,512], index: 1, kind: input, shape index: {}]
  %s2 = inlined_call_operand.hbm [shape: f32[1,100], index: 2, kind: input, shape index: {}]
  %s3 = inlined_call_operand.hbm [shape: f32[1,256], index: 3, kind: input, shape index: {}]
  %s4 = inlined_call_operand.hbm [shape: f32[512,256], index: 4, kind: input, shape index: {}]
  %s5 = inlined_call_operand.hbm [shape: f32[128,256], index: 5, kind: input, shape index: {}]
  %s6 = inlined_call_operand.hbm [shape: f32[1,256], index: 6, kind: input, shape index: {}]
  %s7 = inlined_call_operand.hbm [shape: f32[256,128], index: 7, kind: input, shape index: {}]
  %s8 = inlined_call_operand.hbm [shape: f32[1,128], index: 8, kind: input, shape index: {}]
  %s9 = inlined_call_operand.hbm [shape: f32[8,128], index: 9, kind: output, shape index: {}]
  %s10 = sld [smem:[#allocation0]]
  $region82: #{tpu_custom_call.1} parent=0
    _
  %s12 = ssub.s32 1, %s10
  %s13 = scalar_select 0, %s12, %s10
  $region1: #{tpu_custom_call.1} parent=0
    #allocation2 [shape = 'u8[4096]{0}', space=vmem, size = 0x1000, scoped, tag = 'input window, operand 0, single buffered']
    #allocation3 [shape = 's32[1]{0}', space=sflag, size = 0x4, scoped, tag = 'scoped memory for tpu_custom_call.1']
    #allocation4 [shape = 's32[1]{0}', space=sflag, size = 0x4, scoped, tag = 'scoped memory for tpu_custom_call.1']
    #allocation5 [shape = 'u8[16384]{0}', space=vmem, size = 0x4000, scoped, tag = 'input window, operand 1, single buffered']
    #allocation6 [shape = 's32[1]{0}', space=sflag, size = 0x4, scoped, tag = 'scoped memory for tpu_custom_call.1']
    #allocation7 [shape = 'u8[512]{0}', space=vmem, size = 0x400, scoped, tag = 'input window, operand 2, single buffered']
    #allocation8 [shape = 'u8[1024]{0}', space=vmem, size = 0x400, scoped, tag = 'input window, operand 3, single buffered']
    #allocation9 [shape = 's32[1]{0}', space=sflag, size = 0x4, scoped, tag = 'scoped memory for tpu_custom_call.1']
    #allocation10 [shape = 'u8[524288]{0}', space=vmem, size = 0x80000, scoped, tag = 'input window, operand 4, single buffered']
    #allocation11 [shape = 'u8[131072]{0}', space=vmem, size = 0x20000, scoped, tag = 'input window, operand 5, single buffered']
    #allocation12 [shape = 's32[1]{0}', space=sflag, size = 0x4, scoped, tag = 'scoped memory for tpu_custom_call.1']
    #allocation13 [shape = 'u8[1024]{0}', space=vmem, size = 0x400, scoped, tag = 'input window, operand 6, single buffered']
    #allocation14 [shape = 'u8[131072]{0}', space=vmem, size = 0x20000, scoped, tag = 'input window, operand 7, single buffered']
    #allocation15 [shape = 's32[1]{0}', space=sflag, size = 0x4, scoped, tag = 'scoped memory for tpu_custom_call.1']
    #allocation16 [shape = 'u8[512]{0}', space=vmem, size = 0x400, scoped, tag = 'input window, operand 8, single buffered']
    #allocation17 [shape = 'u8[4096]{0}', space=vmem, size = 0x1000, scoped, tag = 'output window, operand 0, single buffered']
    %14 = vsyncpa [#allocation3], 0
    %15 = vsyncpa [#allocation6], 0
    %16 = vsyncpa [#allocation9], 0
    %17 = vsyncpa [#allocation12], 0
    %18 = vsyncpa [#allocation15], 0
    %19 = vsyncpa [#allocation4], 0
    // Predicated region
    $region2: #{tpu_custom_call.1} parent=1 // pred_check
      _
    $region3: #{tpu_custom_call.1} parent=1 // pred_check_branch
      %21 = sbr.rel (0) target = $region5
    $region4: #{tpu_custom_call.1} parent=1 // pred_region
      %s23 = ssub.s32 128, 128
      %24 = vsyncadd [#allocation3], %s23
      %s26 = sshll.u32 [#allocation2], 4
      %s27 = int_to_ptr.vmem [resolvable:$true] %s26
      %29 = dma.hbm_to_vmem [thread:$0]  %s0, 128, %s27, [#allocation3]
    $region5: #{tpu_custom_call.1} parent=1 // pred_fallthru
      _
    // Predicated region
    $region6: #{tpu_custom_call.1} parent=1 // pred_check
      _
    $region7: #{tpu_custom_call.1} parent=1 // pred_check_branch
      %31 = sbr.rel (0) target = $region9
    $region8: #{tpu_custom_call.1} parent=1 // pred_region
      %s33 = ssub.s32 512, 512
      %34 = vsyncadd [#allocation6], %s33
      %s36 = sshll.u32 [#allocation5], 4
      %s37 = int_to_ptr.vmem [resolvable:$true] %s36
      %39 = dma.hbm_to_vmem [thread:$0]  %s1, 512, %s37, [#allocation6]
    $region9: #{tpu_custom_call.1} parent=1 // pred_fallthru
      _
    // Predicated region
    $region10: #{tpu_custom_call.1} parent=1 // pred_check
      _
    $region11: #{tpu_custom_call.1} parent=1 // pred_check_branch
      %41 = sbr.rel (0) target = $region13
    $region12: #{tpu_custom_call.1} parent=1 // pred_region
      %s43 = ssub.s32 16, 16
      %44 = vsyncadd [#allocation6], %s43
      %s46 = sshll.u32 [#allocation7], 4
      %s47 = int_to_ptr.vmem [resolvable:$true] %s46
      %49 = dma.hbm_to_vmem [thread:$0]  %s2, 16, %s47, [#allocation6]
    $region13: #{tpu_custom_call.1} parent=1 // pred_fallthru
      _
    // Predicated region
    $region14: #{tpu_custom_call.1} parent=1 // pred_check
      _
    $region15: #{tpu_custom_call.1} parent=1 // pred_check_branch
      %51 = sbr.rel (0) target = $region17
    $region16: #{tpu_custom_call.1} parent=1 // pred_region
      %s53 = ssub.s32 32, 32
      %54 = vsyncadd [#allocation9], %s53
      %s56 = sshll.u32 [#allocation8], 4
      %s57 = int_to_ptr.vmem [resolvable:$true] %s56
      %59 = dma.hbm_to_vmem [thread:$0]  %s3, 32, %s57, [#allocation9]
    $region17: #{tpu_custom_call.1} parent=1 // pred_fallthru
      _
    // Predicated region
    $region18: #{tpu_custom_call.1} parent=1 // pred_check
      _
    $region19: #{tpu_custom_call.1} parent=1 // pred_check_branch
      %61 = sbr.rel (0) target = $region21
    $region20: #{tpu_custom_call.1} parent=1 // pred_region
      %s63 = ssub.s32 16384, 16384
      %64 = vsyncadd [#allocation9], %s63
      %s65 = sshll.u32 [#allocation10], 4
      %s66 = int_to_ptr.vmem [resolvable:$true] %s65
      %71 = dma.hbm_to_vmem [thread:$0]  %s4, 16384, %s66, [#allocation9], 256, 256, 16
    $region21: #{tpu_custom_call.1} parent=1 // pred_fallthru
      _
    // Predicated region
    $region22: #{tpu_custom_call.1} parent=1 // pred_check
      _
    $region23: #{tpu_custom_call.1} parent=1 // pred_check_branch
      %73 = sbr.rel (0) target = $region25
    $region24: #{tpu_custom_call.1} parent=1 // pred_region
      %s75 = ssub.s32 4096, 4096
      %76 = vsyncadd [#allocation12], %s75
      %s77 = sshll.u32 [#allocation11], 4
      %s78 = int_to_ptr.vmem [resolvable:$true] %s77
      %83 = dma.hbm_to_vmem [thread:$0]  %s5, 4096, %s78, [#allocation12], 256, 256, 16
    $region25: #{tpu_custom_call.1} parent=1 // pred_fallthru
      _
    // Predicated region
    $region26: #{tpu_custom_call.1} parent=1 // pred_check
      _
    $region27: #{tpu_custom_call.1} parent=1 // pred_check_branch
      %85 = sbr.rel (0) target = $region29
    $region28: #{tpu_custom_call.1} parent=1 // pred_region
      %s87 = ssub.s32 32, 32
      %88 = vsyncadd [#allocation12], %s87
      %s90 = sshll.u32 [#allocation13], 4
      %s91 = int_to_ptr.vmem [resolvable:$true] %s90
      %93 = dma.hbm_to_vmem [thread:$0]  %s6, 32, %s91, [#allocation12]
    $region29: #{tpu_custom_call.1} parent=1 // pred_fallthru
      _
    // Predicated region
    $region30: #{tpu_custom_call.1} parent=1 // pred_check
      _
    $region31: #{tpu_custom_call.1} parent=1 // pred_check_branch
      %95 = sbr.rel (0) target = $region33
    $region32: #{tpu_custom_call.1} parent=1 // pred_region
      %s97 = ssub.s32 4096, 4096
      %98 = vsyncadd [#allocation15], %s97
      %s99 = sshll.u32 [#allocation14], 4
      %s100 = int_to_ptr.vmem [resolvable:$true] %s99
      %105 = dma.hbm_to_vmem [thread:$0]  %s7, 4096, %s100, [#allocation15], 128, 128, 8
    $region33: #{tpu_custom_call.1} parent=1 // pred_fallthru
      _
    // Predicated region
    $region34: #{tpu_custom_call.1} parent=1 // pred_check
      _
    $region35: #{tpu_custom_call.1} parent=1 // pred_check_branch
      %107 = sbr.rel (0) target = $region37
    $region36: #{tpu_custom_call.1} parent=1 // pred_region
      %s109 = ssub.s32 16, 16
      %110 = vsyncadd [#allocation15], %s109
      %s112 = sshll.u32 [#allocation16], 4
      %s113 = int_to_ptr.vmem [resolvable:$true] %s112
      %115 = dma.hbm_to_vmem [thread:$0]  %s8, 16, %s113, [#allocation15]
    $region37: #{tpu_custom_call.1} parent=1 // pred_fallthru
      _
    // Predicated region
    $region38: #{tpu_custom_call.1} parent=1 // pred_check
      _
    $region39: #{tpu_custom_call.1} parent=1 // pred_check_branch
      %117 = sbr.rel (0) target = $region41
    $region40: #{tpu_custom_call.1} parent=1 // pred_region
      %118 = dma.done [#allocation3], 128
    $region41: #{tpu_custom_call.1} parent=1 // pred_fallthru
      _
    // Predicated region
    $region42: #{tpu_custom_call.1} parent=1 // pred_check
      _
    $region43: #{tpu_custom_call.1} parent=1 // pred_check_branch
      %120 = sbr.rel (0) target = $region45
    $region44: #{tpu_custom_call.1} parent=1 // pred_region
      %121 = dma.done [#allocation6], 512
    $region45: #{tpu_custom_call.1} parent=1 // pred_fallthru
      _
    // Predicated region
    $region46: #{tpu_custom_call.1} parent=1 // pred_check
      _
    $region47: #{tpu_custom_call.1} parent=1 // pred_check_branch
      %123 = sbr.rel (0) target = $region49
    $region48: #{tpu_custom_call.1} parent=1 // pred_region
      %124 = dma.done [#allocation6], 16
    $region49: #{tpu_custom_call.1} parent=1 // pred_fallthru
      _
    // Predicated region
    $region50: #{tpu_custom_call.1} parent=1 // pred_check
      _
    $region51: #{tpu_custom_call.1} parent=1 // pred_check_branch
      %126 = sbr.rel (0) target = $region53
    $region52: #{tpu_custom_call.1} parent=1 // pred_region
      %127 = dma.done [#allocation9], 32
    $region53: #{tpu_custom_call.1} parent=1 // pred_fallthru
      _
    // Predicated region
    $region54: #{tpu_custom_call.1} parent=1 // pred_check
      _
    $region55: #{tpu_custom_call.1} parent=1 // pred_check_branch
      %129 = sbr.rel (0) target = $region57
    $region56: #{tpu_custom_call.1} parent=1 // pred_region
      %130 = dma.done [#allocation9], 16384
    $region57: #{tpu_custom_call.1} parent=1 // pred_fallthru
      _
    // Predicated region
    $region58: #{tpu_custom_call.1} parent=1 // pred_check
      _
    $region59: #{tpu_custom_call.1} parent=1 // pred_check_branch
      %132 = sbr.rel (0) target = $region61
    $region60: #{tpu_custom_call.1} parent=1 // pred_region
      %133 = dma.done [#allocation12], 4096
    $region61: #{tpu_custom_call.1} parent=1 // pred_fallthru
      _
    // Predicated region
    $region62: #{tpu_custom_call.1} parent=1 // pred_check
      _
    $region63: #{tpu_custom_call.1} parent=1 // pred_check_branch
      %135 = sbr.rel (0) target = $region65
    $region64: #{tpu_custom_call.1} parent=1 // pred_region
      %136 = dma.done [#allocation12], 32
    $region65: #{tpu_custom_call.1} parent=1 // pred_fallthru
      _
    // Predicated region
    $region66: #{tpu_custom_call.1} parent=1 // pred_check
      _
    $region67: #{tpu_custom_call.1} parent=1 // pred_check_branch
      %138 = sbr.rel (0) target = $region69
    $region68: #{tpu_custom_call.1} parent=1 // pred_region
      %139 = dma.done [#allocation15], 4096
    $region69: #{tpu_custom_call.1} parent=1 // pred_fallthru
      _
    // Predicated region
    $region70: #{tpu_custom_call.1} parent=1 // pred_check
      _
    $region71: #{tpu_custom_call.1} parent=1 // pred_check_branch
      %141 = sbr.rel (0) target = $region73
    $region72: #{tpu_custom_call.1} parent=1 // pred_region
      %142 = dma.done [#allocation15], 16
    $region73: #{tpu_custom_call.1} parent=1 // pred_fallthru
      _
    %v143 = vld [vmem:[#allocation5] sm:$0xff]
    %v144 = vld [vmem:[#allocation5 + $0x8] sm:$0xff]
    %v145 = vld [vmem:[#allocation5 + $0x10] sm:$0xff]
    %v146 = vld [vmem:[#allocation5 + $0x18] sm:$0xff]
    %v147 = vld [vmem:[#allocation10] sm:$0xff]
    %v148 = vld [vmem:[#allocation10 + $0x8] sm:$0xff]
    %v149 = vld [vmem:[#allocation10 + $0x10] sm:$0xff]
    %v150 = vld [vmem:[#allocation10 + $0x18] sm:$0xff]
    %v151 = vld [vmem:[#allocation10 + $0x20] sm:$0xff]
    %v152 = vld [vmem:[#allocation10 + $0x28] sm:$0xff]
    %v153 = vld [vmem:[#allocation10 + $0x30] sm:$0xff]
    %v154 = vld [vmem:[#allocation10 + $0x38] sm:$0xff]
    %v155 = vld [vmem:[#allocation10 + $0x40] sm:$0xff]
    %v156 = vld [vmem:[#allocation10 + $0x48] sm:$0xff]
    %v157 = vld [vmem:[#allocation10 + $0x50] sm:$0xff]
    %v158 = vld [vmem:[#allocation10 + $0x58] sm:$0xff]
    %v159 = vld [vmem:[#allocation10 + $0x60] sm:$0xff]
    %v160 = vld [vmem:[#allocation10 + $0x68] sm:$0xff]
    %v161 = vld [vmem:[#allocation10 + $0x70] sm:$0xff]
    %v162 = vld [vmem:[#allocation10 + $0x78] sm:$0xff]
    %v163 = vld [vmem:[#allocation10 + $0x80] sm:$0xff]
    %v164 = vld [vmem:[#allocation10 + $0x88] sm:$0xff]
    %v165 = vld [vmem:[#allocation10 + $0x90] sm:$0xff]
    %v166 = vld [vmem:[#allocation10 + $0x98] sm:$0xff]
    %v167 = vld [vmem:[#allocation10 + $0xa0] sm:$0xff]
    %v168 = vld [vmem:[#allocation10 + $0xa8] sm:$0xff]
    %v169 = vld [vmem:[#allocation10 + $0xb0] sm:$0xff]
    %v170 = vld [vmem:[#allocation10 + $0xb8] sm:$0xff]
    %v171 = vld [vmem:[#allocation10 + $0xc0] sm:$0xff]
    %v172 = vld [vmem:[#allocation10 + $0xc8] sm:$0xff]
    %v173 = vld [vmem:[#allocation10 + $0xd0] sm:$0xff]
    %v174 = vld [vmem:[#allocation10 + $0xd8] sm:$0xff]
    %v175 = vld [vmem:[#allocation10 + $0xe0] sm:$0xff]
    %v176 = vld [vmem:[#allocation10 + $0xe8] sm:$0xff]
    %v177 = vld [vmem:[#allocation10 + $0xf0] sm:$0xff]
    %v178 = vld [vmem:[#allocation10 + $0xf8] sm:$0xff]
    %v179 = vld [vmem:[#allocation10 + $0x100] sm:$0xff]
    %v180 = vld [vmem:[#allocation10 + $0x108] sm:$0xff]
    %v181 = vld [vmem:[#allocation10 + $0x110] sm:$0xff]
    %v182 = vld [vmem:[#allocation10 + $0x118] sm:$0xff]
    %v183 = vld [vmem:[#allocation10 + $0x120] sm:$0xff]
    %v184 = vld [vmem:[#allocation10 + $0x128] sm:$0xff]
    %v185 = vld [vmem:[#allocation10 + $0x130] sm:$0xff]
    %v186 = vld [vmem:[#allocation10 + $0x138] sm:$0xff]
    %v187 = vld [vmem:[#allocation10 + $0x140] sm:$0xff]
    %v188 = vld [vmem:[#allocation10 + $0x148] sm:$0xff]
    %v189 = vld [vmem:[#allocation10 + $0x150] sm:$0xff]
    %v190 = vld [vmem:[#allocation10 + $0x158] sm:$0xff]
    %v191 = vld [vmem:[#allocation10 + $0x160] sm:$0xff]
    %v192 = vld [vmem:[#allocation10 + $0x168] sm:$0xff]
    %v193 = vld [vmem:[#allocation10 + $0x170] sm:$0xff]
    %v194 = vld [vmem:[#allocation10 + $0x178] sm:$0xff]
    %v195 = vld [vmem:[#allocation10 + $0x180] sm:$0xff]
    %v196 = vld [vmem:[#allocation10 + $0x188] sm:$0xff]
    %v197 = vld [vmem:[#allocation10 + $0x190] sm:$0xff]
    %v198 = vld [vmem:[#allocation10 + $0x198] sm:$0xff]
    %v199 = vld [vmem:[#allocation10 + $0x1a0] sm:$0xff]
    %v200 = vld [vmem:[#allocation10 + $0x1a8] sm:$0xff]
    %v201 = vld [vmem:[#allocation10 + $0x1b0] sm:$0xff]
    %v202 = vld [vmem:[#allocation10 + $0x1b8] sm:$0xff]
    %v203 = vld [vmem:[#allocation10 + $0x1c0] sm:$0xff]
    %v204 = vld [vmem:[#allocation10 + $0x1c8] sm:$0xff]
    %v205 = vld [vmem:[#allocation10 + $0x1d0] sm:$0xff]
    %v206 = vld [vmem:[#allocation10 + $0x1d8] sm:$0xff]
    %v207 = vld [vmem:[#allocation10 + $0x1e0] sm:$0xff]
    %v208 = vld [vmem:[#allocation10 + $0x1e8] sm:$0xff]
    %v209 = vld [vmem:[#allocation10 + $0x1f0] sm:$0xff]
    %v210 = vld [vmem:[#allocation10 + $0x1f8] sm:$0xff]
    %v211 = vld [vmem:[#allocation10 + $0x200] sm:$0xff]
    %v212 = vld [vmem:[#allocation10 + $0x208] sm:$0xff]
    %v213 = vld [vmem:[#allocation10 + $0x210] sm:$0xff]
    %v214 = vld [vmem:[#allocation10 + $0x218] sm:$0xff]
    %v215 = vld [vmem:[#allocation10 + $0x220] sm:$0xff]
    %v216 = vld [vmem:[#allocation10 + $0x228] sm:$0xff]
    %v217 = vld [vmem:[#allocation10 + $0x230] sm:$0xff]
    %v218 = vld [vmem:[#allocation10 + $0x238] sm:$0xff]
    %v219 = vld [vmem:[#allocation10 + $0x240] sm:$0xff]
    %v220 = vld [vmem:[#allocation10 + $0x248] sm:$0xff]
    %v221 = vld [vmem:[#allocation10 + $0x250] sm:$0xff]
    %v222 = vld [vmem:[#allocation10 + $0x258] sm:$0xff]
    %v223 = vld [vmem:[#allocation10 + $0x260] sm:$0xff]
    %v224 = vld [vmem:[#allocation10 + $0x268] sm:$0xff]
    %v225 = vld [vmem:[#allocation10 + $0x270] sm:$0xff]
    %v226 = vld [vmem:[#allocation10 + $0x278] sm:$0xff]
    %v227 = vld [vmem:[#allocation10 + $0x280] sm:$0xff]
    %v228 = vld [vmem:[#allocation10 + $0x288] sm:$0xff]
    %v229 = vld [vmem:[#allocation10 + $0x290] sm:$0xff]
    %v230 = vld [vmem:[#allocation10 + $0x298] sm:$0xff]
    %v231 = vld [vmem:[#allocation10 + $0x2a0] sm:$0xff]
    %v232 = vld [vmem:[#allocation10 + $0x2a8] sm:$0xff]
    %v233 = vld [vmem:[#allocation10 + $0x2b0] sm:$0xff]
    %v234 = vld [vmem:[#allocation10 + $0x2b8] sm:$0xff]
    %v235 = vld [vmem:[#allocation10 + $0x2c0] sm:$0xff]
    %v236 = vld [vmem:[#allocation10 + $0x2c8] sm:$0xff]
    %v237 = vld [vmem:[#allocation10 + $0x2d0] sm:$0xff]
    %v238 = vld [vmem:[#allocation10 + $0x2d8] sm:$0xff]
    %v239 = vld [vmem:[#allocation10 + $0x2e0] sm:$0xff]
    %v240 = vld [vmem:[#allocation10 + $0x2e8] sm:$0xff]
    %v241 = vld [vmem:[#allocation10 + $0x2f0] sm:$0xff]
    %v242 = vld [vmem:[#allocation10 + $0x2f8] sm:$0xff]
    %v243 = vld [vmem:[#allocation10 + $0x300] sm:$0xff]
    %v244 = vld [vmem:[#allocation10 + $0x308] sm:$0xff]
    %v245 = vld [vmem:[#allocation10 + $0x310] sm:$0xff]
    %v246 = vld [vmem:[#allocation10 + $0x318] sm:$0xff]
    %v247 = vld [vmem:[#allocation10 + $0x320] sm:$0xff]
    %v248 = vld [vmem:[#allocation10 + $0x328] sm:$0xff]
    %v249 = vld [vmem:[#allocation10 + $0x330] sm:$0xff]
    %v250 = vld [vmem:[#allocation10 + $0x338] sm:$0xff]
    %v251 = vld [vmem:[#allocation10 + $0x340] sm:$0xff]
    %v252 = vld [vmem:[#allocation10 + $0x348] sm:$0xff]
    %v253 = vld [vmem:[#allocation10 + $0x350] sm:$0xff]
    %v254 = vld [vmem:[#allocation10 + $0x358] sm:$0xff]
    %v255 = vld [vmem:[#allocation10 + $0x360] sm:$0xff]
    %v256 = vld [vmem:[#allocation10 + $0x368] sm:$0xff]
    %v257 = vld [vmem:[#allocation10 + $0x370] sm:$0xff]
    %v258 = vld [vmem:[#allocation10 + $0x378] sm:$0xff]
    %v259 = vld [vmem:[#allocation10 + $0x380] sm:$0xff]
    %v260 = vld [vmem:[#allocation10 + $0x388] sm:$0xff]
    %v261 = vld [vmem:[#allocation10 + $0x390] sm:$0xff]
    %v262 = vld [vmem:[#allocation10 + $0x398] sm:$0xff]
    %v263 = vld [vmem:[#allocation10 + $0x3a0] sm:$0xff]
    %v264 = vld [vmem:[#allocation10 + $0x3a8] sm:$0xff]
    %v265 = vld [vmem:[#allocation10 + $0x3b0] sm:$0xff]
    %v266 = vld [vmem:[#allocation10 + $0x3b8] sm:$0xff]
    %v267 = vld [vmem:[#allocation10 + $0x3c0] sm:$0xff]
    %v268 = vld [vmem:[#allocation10 + $0x3c8] sm:$0xff]
    %v269 = vld [vmem:[#allocation10 + $0x3d0] sm:$0xff]
    %v270 = vld [vmem:[#allocation10 + $0x3d8] sm:$0xff]
    %v271 = vld [vmem:[#allocation10 + $0x3e0] sm:$0xff]
    %v272 = vld [vmem:[#allocation10 + $0x3e8] sm:$0xff]
    %v273 = vld [vmem:[#allocation10 + $0x3f0] sm:$0xff]
    %v274 = vld [vmem:[#allocation10 + $0x3f8] sm:$0xff]
    %v275 = vld [vmem:[#allocation2] sm:$0xff]
    %v276 = vld [vmem:[#allocation8] sm:$0x3]
    %278 = vset.pattern.permute.xlu0 0
    %279 = vperm.xlu0 %278, %v275
    %v280 = vpop.permute.xlu0 %279
    %v283 = vlaneseq
    %v284 = vshrl.u32 %v283, 7
    %v285 = vsub.s32 0, %v284
    %v286 = vrot.slane %v276, %v285
    %v287 = vlaneseq
    %v288 = vshrl.u32 %v287, 7
    %v289 = vsub.s32 1, %v288
    %v290 = vrot.slane %v276, %v289
    %v293 = vmul.f32 %v280, %v286
    %v294 = vmul.f32 %v280, %v290
    %295 = vmatprep.subr.mxu0 %v148
    %296 = vmatpush1.msra.mxu0 %v147
    %297 = vmatprep.subr.mxu0 %v150
    %298 = vmatpush1.msra.mxu0 %v149
    %299 = vmatprep.subr.mxu0 %v152
    %300 = vmatpush1.msra.mxu0 %v151
    %301 = vmatprep.subr.mxu0 %v154
    %302 = vmatpush1.msra.mxu0 %v153
    %303 = vmatprep.subr.mxu0 %v156
    %304 = vmatpush1.msra.mxu0 %v155
    %305 = vmatprep.subr.mxu0 %v158
    %306 = vmatpush1.msra.mxu0 %v157
    %307 = vmatprep.subr.mxu0 %v160
    %308 = vmatpush1.msra.mxu0 %v159
    %309 = vmatprep.subr.mxu0 %v162
    %310 = vmatpush1.msra.mxu0 %v161
    %311 = vmatprep.subr.mxu0 %v164
    %312 = vmatpush1.msra.mxu0 %v163
    %313 = vmatprep.subr.mxu0 %v166
    %314 = vmatpush1.msra.mxu0 %v165
    %315 = vmatprep.subr.mxu0 %v168
    %316 = vmatpush1.msra.mxu0 %v167
    %317 = vmatprep.subr.mxu0 %v170
    %318 = vmatpush1.msra.mxu0 %v169
    %319 = vmatprep.subr.mxu0 %v172
    %320 = vmatpush1.msra.mxu0 %v171
    %321 = vmatprep.subr.mxu0 %v174
    %322 = vmatpush1.msra.mxu0 %v173
    %323 = vmatprep.subr.mxu0 %v176
    %324 = vmatpush1.msra.mxu0 %v175
    %325 = vmatprep.subr.mxu0 %v178
    %326 = vmatpush1.msra.mxu0 %v177
    %327 = vmatprep.subr.mxu0 %v180
    %328 = vmatpush1.msra.mxu0 %v179
    %329 = vmatprep.subr.mxu0 %v182
    %330 = vmatpush1.msra.mxu0 %v181
    %331 = vmatprep.subr.mxu0 %v184
    %332 = vmatpush1.msra.mxu0 %v183
    %333 = vmatprep.subr.mxu0 %v186
    %334 = vmatpush1.msra.mxu0 %v185
    %335 = vmatprep.subr.mxu0 %v188
    %336 = vmatpush1.msra.mxu0 %v187
    %337 = vmatprep.subr.mxu0 %v190
    %338 = vmatpush1.msra.mxu0 %v189
    %339 = vmatprep.subr.mxu0 %v192
    %340 = vmatpush1.msra.mxu0 %v191
    %341 = vmatprep.subr.mxu0 %v194
    %342 = vmatpush1.msra.mxu0 %v193
    %343 = vmatprep.subr.mxu0 %v196
    %344 = vmatpush1.msra.mxu0 %v195
    %345 = vmatprep.subr.mxu0 %v198
    %346 = vmatpush1.msra.mxu0 %v197
    %347 = vmatprep.subr.mxu0 %v200
    %348 = vmatpush1.msra.mxu0 %v199
    %349 = vmatprep.subr.mxu0 %v202
    %350 = vmatpush1.msra.mxu0 %v201
    %351 = vmatprep.subr.mxu0 %v204
    %352 = vmatpush1.msra.mxu0 %v203
    %353 = vmatprep.subr.mxu0 %v206
    %354 = vmatpush1.msra.mxu0 %v205
    %355 = vmatprep.subr.mxu0 %v208
    %356 = vmatpush1.msra.mxu0 %v207
    %357 = vmatprep.subr.mxu0 %v210
    %358 = vmatpush1.msra.mxu0 %v209
    %359 = vmatprep.mubr.f32.mxu0 %v144
    %360 = vmatmul.mubr.f32.gmra.mrb[0].mxu0 %v143
    %v361 = vpop.f32.mrb[0].mxu0
    %v362 = vadd.f32 %v293, %v361
    %v363 = vpop.f32.mrb[0].mxu0
    %v364 = vadd.f32 %v294, %v363
    %365 = vdwg.mxu0
    %366 = vmatprep.subr.mxu0 %v212
    %367 = vmatpush1.msra.mxu0 %v211
    %368 = vmatprep.subr.mxu0 %v214
    %369 = vmatpush1.msra.mxu0 %v213
    %370 = vmatprep.subr.mxu0 %v216
    %371 = vmatpush1.msra.mxu0 %v215
    %372 = vmatprep.subr.mxu0 %v218
    %373 = vmatpush1.msra.mxu0 %v217
    %374 = vmatprep.subr.mxu0 %v220
    %375 = vmatpush1.msra.mxu0 %v219
    %376 = vmatprep.subr.mxu0 %v222
    %377 = vmatpush1.msra.mxu0 %v221
    %378 = vmatprep.subr.mxu0 %v224
    %379 = vmatpush1.msra.mxu0 %v223
    %380 = vmatprep.subr.mxu0 %v226
    %381 = vmatpush1.msra.mxu0 %v225
    %382 = vmatprep.subr.mxu0 %v228
    %383 = vmatpush1.msra.mxu0 %v227
    %384 = vmatprep.subr.mxu0 %v230
    %385 = vmatpush1.msra.mxu0 %v229
    %386 = vmatprep.subr.mxu0 %v232
    %387 = vmatpush1.msra.mxu0 %v231
    %388 = vmatprep.subr.mxu0 %v234
    %389 = vmatpush1.msra.mxu0 %v233
    %390 = vmatprep.subr.mxu0 %v236
    %391 = vmatpush1.msra.mxu0 %v235
    %392 = vmatprep.subr.mxu0 %v238
    %393 = vmatpush1.msra.mxu0 %v237
    %394 = vmatprep.subr.mxu0 %v240
    %395 = vmatpush1.msra.mxu0 %v239
    %396 = vmatprep.subr.mxu0 %v242
    %397 = vmatpush1.msra.mxu0 %v241
    %398 = vmatprep.subr.mxu0 %v244
    %399 = vmatpush1.msra.mxu0 %v243
    %400 = vmatprep.subr.mxu0 %v246
    %401 = vmatpush1.msra.mxu0 %v245
    %402 = vmatprep.subr.mxu0 %v248
    %403 = vmatpush1.msra.mxu0 %v247
    %404 = vmatprep.subr.mxu0 %v250
    %405 = vmatpush1.msra.mxu0 %v249
    %406 = vmatprep.subr.mxu0 %v252
    %407 = vmatpush1.msra.mxu0 %v251
    %408 = vmatprep.subr.mxu0 %v254
    %409 = vmatpush1.msra.mxu0 %v253
    %410 = vmatprep.subr.mxu0 %v256
    %411 = vmatpush1.msra.mxu0 %v255
    %412 = vmatprep.subr.mxu0 %v258
    %413 = vmatpush1.msra.mxu0 %v257
    %414 = vmatprep.subr.mxu0 %v260
    %415 = vmatpush1.msra.mxu0 %v259
    %416 = vmatprep.subr.mxu0 %v262
    %417 = vmatpush1.msra.mxu0 %v261
    %418 = vmatprep.subr.mxu0 %v264
    %419 = vmatpush1.msra.mxu0 %v263
    %420 = vmatprep.subr.mxu0 %v266
    %421 = vmatpush1.msra.mxu0 %v265
    %422 = vmatprep.subr.mxu0 %v268
    %423 = vmatpush1.msra.mxu0 %v267
    %424 = vmatprep.subr.mxu0 %v270
    %425 = vmatpush1.msra.mxu0 %v269
    %426 = vmatprep.subr.mxu0 %v272
    %427 = vmatpush1.msra.mxu0 %v271
    %428 = vmatprep.subr.mxu0 %v274
    %429 = vmatpush1.msra.mxu0 %v273
    %430 = vmatprep.mubr.f32.mxu0 %v146
    %431 = vmatmul.mubr.f32.gmra.mrb[0].mxu0 %v145
    %v432 = vpop.f32.mrb[0].mxu0
    %v433 = vadd.f32 %v362, %v432
    %v434 = vpop.f32.mrb[0].mxu0
    %v435 = vadd.f32 %v364, %v434
    %436 = vdwg.mxu0
    %v437 = vlaneseq
    %v438 = vand.u32 %v437, 127
    %vm439 = vcmp.lt.s32.totalorder %v438, 100
    %v440 = vld [vmem:[#allocation7] sm:$0x1]
    %v441 = vsel %vm439, %v440, 0.0
    %v442 = vld [vmem:[#allocation11] sm:$0xff]
    %v443 = vld [vmem:[#allocation11 + $0x8] sm:$0xff]
    %v444 = vld [vmem:[#allocation11 + $0x10] sm:$0xff]
    %v445 = vld [vmem:[#allocation11 + $0x18] sm:$0xff]
    %v446 = vld [vmem:[#allocation11 + $0x20] sm:$0xff]
    %v447 = vld [vmem:[#allocation11 + $0x28] sm:$0xff]
    %v448 = vld [vmem:[#allocation11 + $0x30] sm:$0xff]
    %v449 = vld [vmem:[#allocation11 + $0x38] sm:$0xff]
    %v450 = vld [vmem:[#allocation11 + $0x40] sm:$0xff]
    %v451 = vld [vmem:[#allocation11 + $0x48] sm:$0xff]
    %v452 = vld [vmem:[#allocation11 + $0x50] sm:$0xff]
    %v453 = vld [vmem:[#allocation11 + $0x58] sm:$0xff]
    %v454 = vld [vmem:[#allocation11 + $0x60] sm:$0xff]
    %v455 = vld [vmem:[#allocation11 + $0x68] sm:$0xff]
    %v456 = vld [vmem:[#allocation11 + $0x70] sm:$0xff]
    %v457 = vld [vmem:[#allocation11 + $0x78] sm:$0xff]
    %v458 = vld [vmem:[#allocation11 + $0x80] sm:$0xff]
    %v459 = vld [vmem:[#allocation11 + $0x88] sm:$0xff]
    %v460 = vld [vmem:[#allocation11 + $0x90] sm:$0xff]
    %v461 = vld [vmem:[#allocation11 + $0x98] sm:$0xff]
    %v462 = vld [vmem:[#allocation11 + $0xa0] sm:$0xff]
    %v463 = vld [vmem:[#allocation11 + $0xa8] sm:$0xff]
    %v464 = vld [vmem:[#allocation11 + $0xb0] sm:$0xff]
    %v465 = vld [vmem:[#allocation11 + $0xb8] sm:$0xff]
    %v466 = vld [vmem:[#allocation11 + $0xc0] sm:$0xff]
    %v467 = vld [vmem:[#allocation11 + $0xc8] sm:$0xff]
    %v468 = vld [vmem:[#allocation11 + $0xd0] sm:$0xff]
    %v469 = vld [vmem:[#allocation11 + $0xd8] sm:$0xff]
    %v470 = vld [vmem:[#allocation11 + $0xe0] sm:$0xff]
    %v471 = vld [vmem:[#allocation11 + $0xe8] sm:$0xff]
    %v472 = vld [vmem:[#allocation11 + $0xf0] sm:$0xff]
    %v473 = vld [vmem:[#allocation11 + $0xf8] sm:$0xff]
    %474 = vmatprep.subr.mxu0 %v443
    %475 = vmatpush1.msra.mxu0 %v442
    %476 = vmatprep.subr.mxu0 %v445
    %477 = vmatpush1.msra.mxu0 %v444
    %478 = vmatprep.subr.mxu0 %v447
    %479 = vmatpush1.msra.mxu0 %v446
    %480 = vmatprep.subr.mxu0 %v449
    %481 = vmatpush1.msra.mxu0 %v448
    %482 = vmatprep.subr.mxu0 %v451
    %483 = vmatpush1.msra.mxu0 %v450
    %484 = vmatprep.subr.mxu0 %v453
    %485 = vmatpush1.msra.mxu0 %v452
    %486 = vmatprep.subr.mxu0 %v455
    %487 = vmatpush1.msra.mxu0 %v454
    %488 = vmatprep.subr.mxu0 %v457
    %489 = vmatpush1.msra.mxu0 %v456
    %490 = vmatprep.subr.mxu0 %v459
    %491 = vmatpush1.msra.mxu0 %v458
    %492 = vmatprep.subr.mxu0 %v461
    %493 = vmatpush1.msra.mxu0 %v460
    %494 = vmatprep.subr.mxu0 %v463
    %495 = vmatpush1.msra.mxu0 %v462
    %496 = vmatprep.subr.mxu0 %v465
    %497 = vmatpush1.msra.mxu0 %v464
    %498 = vmatprep.subr.mxu0 %v467
    %499 = vmatpush1.msra.mxu0 %v466
    %500 = vmatprep.subr.mxu0 %v469
    %501 = vmatpush1.msra.mxu0 %v468
    %502 = vmatprep.subr.mxu0 %v471
    %503 = vmatpush1.msra.mxu0 %v470
    %504 = vmatprep.subr.mxu0 %v473
    %505 = vmatpush1.msra.mxu0 %v472
    %506 = vmatprep.subr.mxu0 0.0
    %507 = vmatpush1.msra.mxu0 0.0
    %508 = vmatprep.subr.mxu0 0.0
    %509 = vmatpush1.msra.mxu0 0.0
    %510 = vmatprep.subr.mxu0 0.0
    %511 = vmatpush1.msra.mxu0 0.0
    %512 = vmatprep.subr.mxu0 0.0
    %513 = vmatpush1.msra.mxu0 0.0
    %514 = vmatprep.subr.mxu0 0.0
    %515 = vmatpush1.msra.mxu0 0.0
    %516 = vmatprep.subr.mxu0 0.0
    %517 = vmatpush1.msra.mxu0 0.0
    %518 = vmatprep.subr.mxu0 0.0
    %519 = vmatpush1.msra.mxu0 0.0
    %520 = vmatprep.subr.mxu0 0.0
    %521 = vmatpush1.msra.mxu0 0.0
    %522 = vmatprep.subr.mxu0 0.0
    %523 = vmatpush1.msra.mxu0 0.0
    %524 = vmatprep.subr.mxu0 0.0
    %525 = vmatpush1.msra.mxu0 0.0
    %526 = vmatprep.subr.mxu0 0.0
    %527 = vmatpush1.msra.mxu0 0.0
    %528 = vmatprep.subr.mxu0 0.0
    %529 = vmatpush1.msra.mxu0 0.0
    %530 = vmatprep.subr.mxu0 0.0
    %531 = vmatpush1.msra.mxu0 0.0
    %532 = vmatprep.subr.mxu0 0.0
    %533 = vmatpush1.msra.mxu0 0.0
    %534 = vmatprep.subr.mxu0 0.0
    %535 = vmatpush1.msra.mxu0 0.0
    %536 = vmatprep.subr.mxu0 0.0
    %537 = vmatpush1.msra.mxu0 0.0
    %538 = vmatprep.mubr.f32.mxu0 0.0
    %539 = vmatmul.mubr.f32.gmra.mrb[0].mxu0 %v441
    %v540 = vpop.f32.mrb[0].mxu0
    %v541 = vadd.f32 0.0, %v540
    %v542 = vpop.f32.mrb[0].mxu0
    %v543 = vadd.f32 0.0, %v542
    %544 = vdwg.mxu0
    %v545 = vld [vmem:[#allocation13] sm:$0x3]
    %v547 = vlaneseq
    %v548 = vshrl.u32 %v547, 7
    %v549 = vsub.s32 0, %v548
    %v550 = vrot.slane %v545, %v549
    %v551 = vlaneseq
    %v552 = vshrl.u32 %v551, 7
    %v553 = vsub.s32 1, %v552
    %v554 = vrot.slane %v545, %v553
    %v557 = vadd.f32 %v433, %v550
    %v558 = vadd.f32 %v435, %v554
    %v559 = vlaneseq
    %v560 = vshrl.u32 %v559, 7
    %v561 = vsub.s32 0, %v560
    %v562 = vrot.slane %v541, %v561
    %v563 = vlaneseq
    %v564 = vshrl.u32 %v563, 7
    %v565 = vsub.s32 0, %v564
    %v566 = vrot.slane %v543, %v565
    %v567 = vadd.f32 %v557, %v562
    %v568 = vadd.f32 %v558, %v566
    %vm569 = vcmp.gt.f32.partialorder %v567, 0.0
    %vm570 = vcmp.gt.f32.partialorder %v568, 0.0
    %v571 = vmul.f32 %v567, 0.01
    %v572 = vmul.f32 %v568, 0.01
    %v573 = vsel %vm569, %v567, %v571
    %v574 = vsel %vm570, %v568, %v572
    %v575 = vld [vmem:[#allocation14] sm:$0xff]
    %v576 = vld [vmem:[#allocation14 + $0x8] sm:$0xff]
    %v577 = vld [vmem:[#allocation14 + $0x10] sm:$0xff]
    %v578 = vld [vmem:[#allocation14 + $0x18] sm:$0xff]
    %v579 = vld [vmem:[#allocation14 + $0x20] sm:$0xff]
    %v580 = vld [vmem:[#allocation14 + $0x28] sm:$0xff]
    %v581 = vld [vmem:[#allocation14 + $0x30] sm:$0xff]
    %v582 = vld [vmem:[#allocation14 + $0x38] sm:$0xff]
    %v583 = vld [vmem:[#allocation14 + $0x40] sm:$0xff]
    %v584 = vld [vmem:[#allocation14 + $0x48] sm:$0xff]
    %v585 = vld [vmem:[#allocation14 + $0x50] sm:$0xff]
    %v586 = vld [vmem:[#allocation14 + $0x58] sm:$0xff]
    %v587 = vld [vmem:[#allocation14 + $0x60] sm:$0xff]
    %v588 = vld [vmem:[#allocation14 + $0x68] sm:$0xff]
    %v589 = vld [vmem:[#allocation14 + $0x70] sm:$0xff]
    %v590 = vld [vmem:[#allocation14 + $0x78] sm:$0xff]
    %v591 = vld [vmem:[#allocation14 + $0x80] sm:$0xff]
    %v592 = vld [vmem:[#allocation14 + $0x88] sm:$0xff]
    %v593 = vld [vmem:[#allocation14 + $0x90] sm:$0xff]
    %v594 = vld [vmem:[#allocation14 + $0x98] sm:$0xff]
    %v595 = vld [vmem:[#allocation14 + $0xa0] sm:$0xff]
    %v596 = vld [vmem:[#allocation14 + $0xa8] sm:$0xff]
    %v597 = vld [vmem:[#allocation14 + $0xb0] sm:$0xff]
    %v598 = vld [vmem:[#allocation14 + $0xb8] sm:$0xff]
    %v599 = vld [vmem:[#allocation14 + $0xc0] sm:$0xff]
    %v600 = vld [vmem:[#allocation14 + $0xc8] sm:$0xff]
    %v601 = vld [vmem:[#allocation14 + $0xd0] sm:$0xff]
    %v602 = vld [vmem:[#allocation14 + $0xd8] sm:$0xff]
    %v603 = vld [vmem:[#allocation14 + $0xe0] sm:$0xff]
    %v604 = vld [vmem:[#allocation14 + $0xe8] sm:$0xff]
    %v605 = vld [vmem:[#allocation14 + $0xf0] sm:$0xff]
    %v606 = vld [vmem:[#allocation14 + $0xf8] sm:$0xff]
    %v607 = vld [vmem:[#allocation16] sm:$0x1]
    %v609 = vlaneseq
    %v610 = vshrl.u32 %v609, 7
    %v611 = vsub.s32 0, %v610
    %v612 = vrot.slane %v607, %v611
    %614 = vmatprep.subr.mxu0 0.0
    %615 = vmatpush1.msra.mxu0 %v575
    %616 = vmatprep.subr.mxu0 0.0
    %617 = vmatpush1.msra.mxu0 %v576
    %618 = vmatprep.subr.mxu0 0.0
    %619 = vmatpush1.msra.mxu0 %v577
    %620 = vmatprep.subr.mxu0 0.0
    %621 = vmatpush1.msra.mxu0 %v578
    %622 = vmatprep.subr.mxu0 0.0
    %623 = vmatpush1.msra.mxu0 %v579
    %624 = vmatprep.subr.mxu0 0.0
    %625 = vmatpush1.msra.mxu0 %v580
    %626 = vmatprep.subr.mxu0 0.0
    %627 = vmatpush1.msra.mxu0 %v581
    %628 = vmatprep.subr.mxu0 0.0
    %629 = vmatpush1.msra.mxu0 %v582
    %630 = vmatprep.subr.mxu0 0.0
    %631 = vmatpush1.msra.mxu0 %v583
    %632 = vmatprep.subr.mxu0 0.0
    %633 = vmatpush1.msra.mxu0 %v584
    %634 = vmatprep.subr.mxu0 0.0
    %635 = vmatpush1.msra.mxu0 %v585
    %636 = vmatprep.subr.mxu0 0.0
    %637 = vmatpush1.msra.mxu0 %v586
    %638 = vmatprep.subr.mxu0 0.0
    %639 = vmatpush1.msra.mxu0 %v587
    %640 = vmatprep.subr.mxu0 0.0
    %641 = vmatpush1.msra.mxu0 %v588
    %642 = vmatprep.subr.mxu0 0.0
    %643 = vmatpush1.msra.mxu0 %v589
    %644 = vmatprep.subr.mxu0 0.0
    %645 = vmatpush1.msra.mxu0 %v590
    %646 = vmatprep.subr.mxu0 0.0
    %647 = vmatpush1.msra.mxu0 %v591
    %648 = vmatprep.subr.mxu0 0.0
    %649 = vmatpush1.msra.mxu0 %v592
    %650 = vmatprep.subr.mxu0 0.0
    %651 = vmatpush1.msra.mxu0 %v593
    %652 = vmatprep.subr.mxu0 0.0
    %653 = vmatpush1.msra.mxu0 %v594
    %654 = vmatprep.subr.mxu0 0.0
    %655 = vmatpush1.msra.mxu0 %v595
    %656 = vmatprep.subr.mxu0 0.0
    %657 = vmatpush1.msra.mxu0 %v596
    %658 = vmatprep.subr.mxu0 0.0
    %659 = vmatpush1.msra.mxu0 %v597
    %660 = vmatprep.subr.mxu0 0.0
    %661 = vmatpush1.msra.mxu0 %v598
    %662 = vmatprep.subr.mxu0 0.0
    %663 = vmatpush1.msra.mxu0 %v599
    %664 = vmatprep.subr.mxu0 0.0
    %665 = vmatpush1.msra.mxu0 %v600
    %666 = vmatprep.subr.mxu0 0.0
    %667 = vmatpush1.msra.mxu0 %v601
    %668 = vmatprep.subr.mxu0 0.0
    %669 = vmatpush1.msra.mxu0 %v602
    %670 = vmatprep.subr.mxu0 0.0
    %671 = vmatpush1.msra.mxu0 %v603
    %672 = vmatprep.subr.mxu0 0.0
    %673 = vmatpush1.msra.mxu0 %v604
    %674 = vmatprep.subr.mxu0 0.0
    %675 = vmatpush1.msra.mxu0 %v605
    %676 = vmatprep.subr.mxu0 0.0
    %677 = vmatpush1.msra.mxu0 %v606
    %678 = vmatprep.mubr.f32.mxu0 %v574
    %679 = vmatmul.mubr.f32.gmra.mrb[0].mxu0 %v573
    %v680 = vpop.f32.mrb[0].mxu0
    %v681 = vadd.f32 %v612, %v680
    %v682 = vpop.f32.mrb[0].mxu0
    %683 = vdwg.mxu0
    %684 = vst [vmem:[#allocation17] sm:$0xff] %v681
    // Predicated region
    $region74: #{tpu_custom_call.1} parent=1 // pred_check
      _
    $region75: #{tpu_custom_call.1} parent=1 // pred_check_branch
      %686 = sbr.rel (0) target = $region77
    $region76: #{tpu_custom_call.1} parent=1 // pred_region
      %s688 = ssub.s32 128, 128
      %689 = vsyncadd [#allocation4], %s688
      %s691 = sshll.u32 [#allocation17], 4
      %s692 = int_to_ptr.vmem [resolvable:$true] %s691
      %694 = dma.vmem_to_hbm [thread:$0]  %s692, 128, %s9, [#allocation4]
    $region77: #{tpu_custom_call.1} parent=1 // pred_fallthru
      _
    // Predicated region
    $region78: #{tpu_custom_call.1} parent=1 // pred_check
      _
    $region79: #{tpu_custom_call.1} parent=1 // pred_check_branch
      %696 = sbr.rel (0) target = $region81
    $region80: #{tpu_custom_call.1} parent=1 // pred_region
      %697 = dma.done [#allocation4], 128
    $region81: #{tpu_custom_call.1} parent=1 // pred_fallthru
      _
    %698 = vsyncpa [#allocation3], 1
    %699 = vsyncpa [#allocation6], 1
    %700 = vsyncpa [#allocation9], 1
    %701 = vsyncpa [#allocation12], 1
    %702 = vsyncpa [#allocation15], 1
    %703 = vsyncpa [#allocation4], 1

</llo_original>
